<compile_context>
chip_gen: v5e
topology: v5e:2x2
jax: 0.10.0
libtpu: 0.0.40
codegen_flags: <defaults>
</compile_context>

<pallas_src>
import jax
import jax.numpy as jnp
from jax.experimental import pallas as pl
from jax.experimental.pallas import tpu as pltpu


def _cnn1d_kernel(x_ref, w1_ref, b1_ref, wcat_ref, b2_ref,
                  wf1_ref, bf1_ref, wf2_ref, bf2_ref, o_ref, q_scr):
    f32 = jnp.float32
    bf16 = jnp.bfloat16

    TB, L = x_ref.shape           # batch tile, embedding length
    L2 = L // 2                   # pooled-once length
    L4 = L // 4                   # pooled-twice length

    xv = x_ref[...]               # (TB, L)    f32
    w1 = w1_ref[...]              # (3, 128)   f32
    wcat = wcat_ref[...]          # (128, 192) bf16 : conv2 taps [W0 | W1 | W2]
    bf1 = bf1_ref[...]            # (1, 64)    f32
    wf2 = wf2_ref[...]            # (64, 128)  bf16 (zero-padded N)
    bf2 = bf2_ref[...]            # (1, 128)   f32  (zero-padded)

    # Hoist bias broadcasts out of the unrolled loops (JAX does not CSE them).
    b1_b = jnp.broadcast_to(b1_ref[...], (TB, 128))   # conv1 bias
    b2_b = jnp.broadcast_to(b2_ref[...], (TB, 64))    # conv2 bias

    w1_rows = [w1[k:k + 1, :] for k in range(3)]      # each (1, 128)

    def conv1_relu(m):
        # ReLU(conv1) column m (in_ch=1, k=3, pad=1): pure VPU outer products.
        # Kept f32 for accuracy (bf16 VALU only exists on v6e/v7x anyway).
        acc = b1_b
        for k in range(3):
            c = m + k - 1
            if 0 <= c < L:                            # static zero padding
                acc = acc + xv[:, c:c + 1] * w1_rows[k]
        return jnp.maximum(acc, 0.0)                  # (TB, 128) f32

    def pool1_bf16(t):
        # maxpool(k=2) of ReLU(conv1) at pooled position t; cast to bf16 once
        # right after the max (only the MXU consumes it).
        return jnp.maximum(conv1_relu(2 * t), conv1_relu(2 * t + 1)).astype(bf16)

    # conv2 (in=128, out=64, k=3, pad=1): one N=192 matmul per pooled-once
    # position t; the three 64-wide result slices feed c2_pre[t+1], c2_pre[t],
    # c2_pre[t-1].  c2_pre[pos] completes at t = pos + 1; then
    # q_j = ReLU(max(c2_pre[2j], c2_pre[2j+1]) + b2) goes to the VMEM scratch.
    #
    # TODO(synk): for large embedding_dim (L4 >~ 16) switch this static unroll
    # to lax.fori_loop(unroll=2..4) carrying (acc_prev, acc_cur, c2_even).
    acc_prev = None               # partial c2_pre[t-1]
    acc_cur = None                # partial c2_pre[t]
    c2_even = None                # finished c2_pre at an even position
    for t in range(L2):
        u = jnp.dot(pool1_bf16(t), wcat, preferred_element_type=f32)  # (TB,192)
        if t > 0:
            c2_done = acc_prev + u[:, 128:192]        # c2_pre[t-1] complete
            pos = t - 1
            if pos % 2 == 0:
                c2_even = c2_done
            else:
                j = pos // 2
                q_j = jnp.maximum(jnp.maximum(c2_even, c2_done) + b2_b, 0.0)
                q_scr[:, j * 64:(j + 1) * 64] = q_j.astype(bf16)
            acc_prev = acc_cur + u[:, 64:128]
        else:
            acc_prev = u[:, 64:128]
        acc_cur = u[:, 0:64]
    # Last position pos = L2-1 (odd, since L % 4 == 0) has no right neighbour.
    q_j = jnp.maximum(jnp.maximum(c2_even, acc_prev) + b2_b, 0.0)
    q_scr[:, (L4 - 1) * 64:L4 * 64] = q_j.astype(bf16)

    # fc1: one big-K matmul over the whole pooled feature map.
    f1 = jnp.maximum(
        jnp.dot(q_scr[...], wf1_ref[...], preferred_element_type=f32) + bf1,
        0.0)
    # TODO(synk): nn.Dropout(0.5) is identity at inference (eval mode);
    # training-mode RNG dropout is not implemented.
    out = jnp.dot(f1.astype(bf16), wf2, preferred_element_type=f32) + bf2
    o_ref[...] = out                                  # (TB, 128) lane-dense


def init_params(embedding_dim, key):
    """Deterministic parameters in PyTorch layouts."""
    ks = jax.random.split(key, 8)
    l4 = embedding_dim // 2 // 2
    s = 0.1
    return {
        "conv1_w": s * jax.random.normal(ks[0], (128, 1, 3), jnp.float32),
        "conv1_b": s * jax.random.normal(ks[1], (128,), jnp.float32),
        "conv2_w": s * jax.random.normal(ks[2], (64, 128, 3), jnp.float32),
        "conv2_b": s * jax.random.normal(ks[3], (64,), jnp.float32),
        "fc1_w": s * jax.random.normal(ks[4], (64, 64 * l4), jnp.float32),
        "fc1_b": s * jax.random.normal(ks[5], (64,), jnp.float32),
        "fc2_w": s * jax.random.normal(ks[6], (2, 64), jnp.float32),
        "fc2_b": s * jax.random.normal(ks[7], (2,), jnp.float32),
    }


@jax.jit
def cnn1d_forward(x, params):
    """x: (B, embedding_dim) float32.  Returns (B, 2) float32 (eval mode)."""
    f32, bf16 = jnp.float32, jnp.bfloat16
    B, L = x.shape
    assert L % 4 == 0, "embedding_dim must be divisible by 4"
    L4 = L // 4

    # Batch tile: cap at 128 (vreg pressure) and keep >= 2 grid steps whenever
    # the batch allows it (v7x has 2 TensorCores to shard the parallel axis).
    half = (B + 1) // 2
    TB = min(128, max(8, ((half + 7) // 8) * 8))
    Bp = ((B + TB - 1) // TB) * TB
    xb = x.astype(f32)
    if Bp != B:
        xb = jnp.pad(xb, ((0, Bp - B), (0, 0)))

    # Weight layout prep (PyTorch layouts -> kernel layouts); MXU operands bf16.
    w1 = params["conv1_w"][:, 0, :].T.astype(f32)                     # (3, 128)
    b1 = params["conv1_b"].reshape(1, 128).astype(f32)
    # conv2 taps concatenated on N: wcat[cin, k*64 + cout] = conv2_w[cout, cin, k]
    wcat = jnp.transpose(params["conv2_w"], (1, 2, 0)).reshape(128, 192).astype(bf16)
    b2 = params["conv2_b"].reshape(1, 64).astype(f32)
    # torch flatten of (B, 64, L4) orders features as c*L4 + j; the kernel's
    # scratch orders them as j*64 + c.
    wf1 = jnp.transpose(params["fc1_w"].reshape(64, 64, L4),
                        (2, 1, 0)).reshape(64 * L4, 64).astype(bf16)  # (64*L4, 64)
    bf1 = params["fc1_b"].reshape(1, 64).astype(f32)
    # fc2 padded to 128 output lanes -> lane-dense, unmasked output stores.
    wf2 = jnp.zeros((64, 128), bf16).at[:, :2].set(params["fc2_w"].T.astype(bf16))
    bf2 = jnp.zeros((1, 128), f32).at[:, :2].set(params["fc2_b"].reshape(1, 2))

    const2 = lambda i: (0, 0)      # noqa: E731

    out = pl.pallas_call(
        _cnn1d_kernel,
        out_shape=jax.ShapeDtypeStruct((Bp, 128), f32),
        grid=(Bp // TB,),
        in_specs=[
            pl.BlockSpec((TB, L), lambda i: (i, 0)),
            pl.BlockSpec((3, 128), const2),
            pl.BlockSpec((1, 128), const2),
            pl.BlockSpec((128, 192), const2),
            pl.BlockSpec((1, 64), const2),
            pl.BlockSpec((64 * L4, 64), const2),
            pl.BlockSpec((1, 64), const2),
            pl.BlockSpec((64, 128), const2),
            pl.BlockSpec((1, 128), const2),
        ],
        out_specs=pl.BlockSpec((TB, 128), lambda i: (i, 0)),
        scratch_shapes=[pltpu.VMEM((TB, 64 * L4), bf16)],
        compiler_params=pltpu.CompilerParams(
            dimension_semantics=("parallel",)),
    )(xb, w1, b1, wcat, b2, wf1, bf1, wf2, bf2)

    return out[:B, :2]


def reference_forward(x, params):
    """Pure-JAX f32 reference with PyTorch NCW semantics (eval mode)."""
    B = x.shape[0]
    y = x[:, None, :]                                                  # (B, 1, L)
    dn = ("NCH", "OIH", "NCH")
    y = jax.lax.conv_general_dilated(y, params["conv1_w"], (1,), ((1, 1),),
                                     dimension_numbers=dn)
    y = jnp.maximum(y + params["conv1_b"][None, :, None], 0.0)
    y = jnp.max(y.reshape(B, 128, -1, 2), axis=-1)                     # maxpool k=2
    y = jax.lax.conv_general_dilated(y, params["conv2_w"], (1,), ((1, 1),),
                                     dimension_numbers=dn)
    y = jnp.maximum(y + params["conv2_b"][None, :, None], 0.0)
    y = jnp.max(y.reshape(B, 64, -1, 2), axis=-1)
    y = y.reshape(B, -1)                                               # channel-major flatten
    y = jnp.maximum(y @ params["fc1_w"].T + params["fc1_b"], 0.0)
    return y @ params["fc2_w"].T + params["fc2_b"]


if __name__ == "__main__":
    EMBEDDING_DIM = 16
    BATCH = 2

    key = jax.random.PRNGKey(0)
    k_param, k_x = jax.random.split(key)
    params = init_params(EMBEDDING_DIM, k_param)
    x = jax.random.normal(k_x, (BATCH, EMBEDDING_DIM), jnp.float32)

    out = jax.block_until_ready(cnn1d_forward(x, params))
    ref = reference_forward(x, params)

    assert out.shape == (BATCH, 2)
    # bf16 MXU operands with f32 accumulation -> compare at bf16-level tolerance.
    assert jnp.allclose(out, ref, rtol=2e-2, atol=2e-2), (out, ref)

    print("KERNEL_OK")
</pallas_src>

<mosaic_0001>
module attributes {stable_mosaic.version = 11 : i64} {
  func.func @_cnn1d_kernel(%arg0: i32, %arg1: memref<8x16xf32, #tpu.memory_space<vmem>>, %arg2: memref<3x128xf32, #tpu.memory_space<vmem>>, %arg3: memref<1x128xf32, #tpu.memory_space<vmem>>, %arg4: memref<128x192xbf16, #tpu.memory_space<vmem>>, %arg5: memref<1x64xf32, #tpu.memory_space<vmem>>, %arg6: memref<256x64xbf16, #tpu.memory_space<vmem>>, %arg7: memref<1x64xf32, #tpu.memory_space<vmem>>, %arg8: memref<64x128xbf16, #tpu.memory_space<vmem>>, %arg9: memref<1x128xf32, #tpu.memory_space<vmem>>, %arg10: memref<8x128xf32, #tpu.memory_space<vmem>>, %arg11: memref<8x256xbf16, #tpu.memory_space<vmem>>) attributes {dimension_semantics = [#tpu.dimension_semantics<parallel>], iteration_bounds = array<i64: 1>, scalar_prefetch = 0 : i64, scratch_operands = 1 : i64, tpu.core_type = #tpu.core_type<tc>, window_params = [{transform_indices = @transform_0, window_bounds = array<i64: 8, 16>}, {pipeline_mode = #tpu.pipeline_mode<synchronous>, transform_indices = @transform_1, window_bounds = array<i64: 3, 128>}, {pipeline_mode = #tpu.pipeline_mode<synchronous>, transform_indices = @transform_2, window_bounds = array<i64: 1, 128>}, {pipeline_mode = #tpu.pipeline_mode<synchronous>, transform_indices = @transform_3, window_bounds = array<i64: 128, 192>}, {pipeline_mode = #tpu.pipeline_mode<synchronous>, transform_indices = @transform_4, window_bounds = array<i64: 1, 64>}, {pipeline_mode = #tpu.pipeline_mode<synchronous>, transform_indices = @transform_5, window_bounds = array<i64: 256, 64>}, {pipeline_mode = #tpu.pipeline_mode<synchronous>, transform_indices = @transform_6, window_bounds = array<i64: 1, 64>}, {pipeline_mode = #tpu.pipeline_mode<synchronous>, transform_indices = @transform_7, window_bounds = array<i64: 64, 128>}, {pipeline_mode = #tpu.pipeline_mode<synchronous>, transform_indices = @transform_8, window_bounds = array<i64: 1, 128>}, {transform_indices = @transform_9, window_bounds = array<i64: 8, 128>}]} {
    %c0 = arith.constant 0 : index
    %c0_0 = arith.constant 0 : index
    %0 = vector.load %arg1[%c0, %c0_0] : memref<8x16xf32, #tpu.memory_space<vmem>>, vector<8x16xf32>
    %c0_1 = arith.constant 0 : index
    %c0_2 = arith.constant 0 : index
    %1 = vector.load %arg2[%c0_1, %c0_2] : memref<3x128xf32, #tpu.memory_space<vmem>>, vector<3x128xf32>
    %c0_3 = arith.constant 0 : index
    %c0_4 = arith.constant 0 : index
    %2 = vector.load %arg4[%c0_3, %c0_4] : memref<128x192xbf16, #tpu.memory_space<vmem>>, vector<128x192xbf16>
    %c0_5 = arith.constant 0 : index
    %c0_6 = arith.constant 0 : index
    %3 = vector.load %arg7[%c0_5, %c0_6] : memref<1x64xf32, #tpu.memory_space<vmem>>, vector<1x64xf32>
    %c0_7 = arith.constant 0 : index
    %c0_8 = arith.constant 0 : index
    %4 = vector.load %arg8[%c0_7, %c0_8] : memref<64x128xbf16, #tpu.memory_space<vmem>>, vector<64x128xbf16>
    %c0_9 = arith.constant 0 : index
    %c0_10 = arith.constant 0 : index
    %5 = vector.load %arg9[%c0_9, %c0_10] : memref<1x128xf32, #tpu.memory_space<vmem>>, vector<1x128xf32>
    %c0_11 = arith.constant 0 : index
    %c0_12 = arith.constant 0 : index
    %6 = vector.load %arg3[%c0_11, %c0_12] : memref<1x128xf32, #tpu.memory_space<vmem>>, vector<1x128xf32>
    %7 = vector.shape_cast %6 : vector<1x128xf32> to vector<1x128xf32>
    %8 = vector.broadcast %7 : vector<1x128xf32> to vector<8x128xf32>
    %c0_13 = arith.constant 0 : index
    %c0_14 = arith.constant 0 : index
    %9 = vector.load %arg5[%c0_13, %c0_14] : memref<1x64xf32, #tpu.memory_space<vmem>>, vector<1x64xf32>
    %10 = vector.shape_cast %9 : vector<1x64xf32> to vector<1x64xf32>
    %11 = vector.broadcast %10 : vector<1x64xf32> to vector<8x64xf32>
    %12 = vector.extract_strided_slice %1 {offsets = [0, 0], sizes = [1, 128], strides = [1, 1]} : vector<3x128xf32> to vector<1x128xf32>
    %13 = vector.extract_strided_slice %1 {offsets = [1, 0], sizes = [1, 128], strides = [1, 1]} : vector<3x128xf32> to vector<1x128xf32>
    %14 = vector.extract_strided_slice %1 {offsets = [2, 0], sizes = [1, 128], strides = [1, 1]} : vector<3x128xf32> to vector<1x128xf32>
    %15 = vector.extract_strided_slice %0 {offsets = [0, 0], sizes = [8, 1], strides = [1, 1]} : vector<8x16xf32> to vector<8x1xf32>
    %16 = vector.broadcast %15 : vector<8x1xf32> to vector<8x128xf32>
    %17 = vector.broadcast %13 : vector<1x128xf32> to vector<8x128xf32>
    %18 = arith.mulf %16, %17 : vector<8x128xf32>
    %19 = arith.addf %8, %18 : vector<8x128xf32>
    %20 = vector.extract_strided_slice %0 {offsets = [0, 1], sizes = [8, 1], strides = [1, 1]} : vector<8x16xf32> to vector<8x1xf32>
    %21 = vector.broadcast %20 : vector<8x1xf32> to vector<8x128xf32>
    %22 = vector.broadcast %14 : vector<1x128xf32> to vector<8x128xf32>
    %23 = arith.mulf %21, %22 : vector<8x128xf32>
    %24 = arith.addf %19, %23 : vector<8x128xf32>
    %cst = arith.constant 0.000000e+00 : f32
    %25 = vector.broadcast %cst : f32 to vector<8x128xf32>
    %26 = arith.maximumf %24, %25 : vector<8x128xf32>
    %27 = vector.extract_strided_slice %0 {offsets = [0, 0], sizes = [8, 1], strides = [1, 1]} : vector<8x16xf32> to vector<8x1xf32>
    %28 = vector.broadcast %27 : vector<8x1xf32> to vector<8x128xf32>
    %29 = vector.broadcast %12 : vector<1x128xf32> to vector<8x128xf32>
    %30 = arith.mulf %28, %29 : vector<8x128xf32>
    %31 = arith.addf %8, %30 : vector<8x128xf32>
    %32 = vector.extract_strided_slice %0 {offsets = [0, 1], sizes = [8, 1], strides = [1, 1]} : vector<8x16xf32> to vector<8x1xf32>
    %33 = vector.broadcast %32 : vector<8x1xf32> to vector<8x128xf32>
    %34 = vector.broadcast %13 : vector<1x128xf32> to vector<8x128xf32>
    %35 = arith.mulf %33, %34 : vector<8x128xf32>
    %36 = arith.addf %31, %35 : vector<8x128xf32>
    %37 = vector.extract_strided_slice %0 {offsets = [0, 2], sizes = [8, 1], strides = [1, 1]} : vector<8x16xf32> to vector<8x1xf32>
    %38 = vector.broadcast %37 : vector<8x1xf32> to vector<8x128xf32>
    %39 = vector.broadcast %14 : vector<1x128xf32> to vector<8x128xf32>
    %40 = arith.mulf %38, %39 : vector<8x128xf32>
    %41 = arith.addf %36, %40 : vector<8x128xf32>
    %cst_15 = arith.constant 0.000000e+00 : f32
    %42 = vector.broadcast %cst_15 : f32 to vector<8x128xf32>
    %43 = arith.maximumf %41, %42 : vector<8x128xf32>
    %44 = arith.maximumf %26, %43 : vector<8x128xf32>
    %45 = arith.truncf %44 : vector<8x128xf32> to vector<8x128xbf16>
    %cst_16 = arith.constant dense<0.000000e+00> : vector<8x192xf32>
    %46 = tpu.matmul %45, %2, %cst_16 {dimension_numbers = #tpu.dot_dimension_numbers<[1], [0], [0], [1], [0, 0, 1, 1], [], []>} : vector<8x128xbf16>, vector<128x192xbf16>, vector<8x192xf32> -> vector<8x192xf32>
    %47 = vector.extract_strided_slice %46 {offsets = [0, 64], sizes = [8, 64], strides = [1, 1]} : vector<8x192xf32> to vector<8x64xf32>
    %48 = vector.extract_strided_slice %46 {offsets = [0, 0], sizes = [8, 64], strides = [1, 1]} : vector<8x192xf32> to vector<8x64xf32>
    %49 = vector.extract_strided_slice %0 {offsets = [0, 1], sizes = [8, 1], strides = [1, 1]} : vector<8x16xf32> to vector<8x1xf32>
    %50 = vector.broadcast %49 : vector<8x1xf32> to vector<8x128xf32>
    %51 = vector.broadcast %12 : vector<1x128xf32> to vector<8x128xf32>
    %52 = arith.mulf %50, %51 : vector<8x128xf32>
    %53 = arith.addf %8, %52 : vector<8x128xf32>
    %54 = vector.extract_strided_slice %0 {offsets = [0, 2], sizes = [8, 1], strides = [1, 1]} : vector<8x16xf32> to vector<8x1xf32>
    %55 = vector.broadcast %54 : vector<8x1xf32> to vector<8x128xf32>
    %56 = vector.broadcast %13 : vector<1x128xf32> to vector<8x128xf32>
    %57 = arith.mulf %55, %56 : vector<8x128xf32>
    %58 = arith.addf %53, %57 : vector<8x128xf32>
    %59 = vector.extract_strided_slice %0 {offsets = [0, 3], sizes = [8, 1], strides = [1, 1]} : vector<8x16xf32> to vector<8x1xf32>
    %60 = vector.broadcast %59 : vector<8x1xf32> to vector<8x128xf32>
    %61 = vector.broadcast %14 : vector<1x128xf32> to vector<8x128xf32>
    %62 = arith.mulf %60, %61 : vector<8x128xf32>
    %63 = arith.addf %58, %62 : vector<8x128xf32>
    %cst_17 = arith.constant 0.000000e+00 : f32
    %64 = vector.broadcast %cst_17 : f32 to vector<8x128xf32>
    %65 = arith.maximumf %63, %64 : vector<8x128xf32>
    %66 = vector.extract_strided_slice %0 {offsets = [0, 2], sizes = [8, 1], strides = [1, 1]} : vector<8x16xf32> to vector<8x1xf32>
    %67 = vector.broadcast %66 : vector<8x1xf32> to vector<8x128xf32>
    %68 = vector.broadcast %12 : vector<1x128xf32> to vector<8x128xf32>
    %69 = arith.mulf %67, %68 : vector<8x128xf32>
    %70 = arith.addf %8, %69 : vector<8x128xf32>
    %71 = vector.extract_strided_slice %0 {offsets = [0, 3], sizes = [8, 1], strides = [1, 1]} : vector<8x16xf32> to vector<8x1xf32>
    %72 = vector.broadcast %71 : vector<8x1xf32> to vector<8x128xf32>
    %73 = vector.broadcast %13 : vector<1x128xf32> to vector<8x128xf32>
    %74 = arith.mulf %72, %73 : vector<8x128xf32>
    %75 = arith.addf %70, %74 : vector<8x128xf32>
    %76 = vector.extract_strided_slice %0 {offsets = [0, 4], sizes = [8, 1], strides = [1, 1]} : vector<8x16xf32> to vector<8x1xf32>
    %77 = vector.broadcast %76 : vector<8x1xf32> to vector<8x128xf32>
    %78 = vector.broadcast %14 : vector<1x128xf32> to vector<8x128xf32>
    %79 = arith.mulf %77, %78 : vector<8x128xf32>
    %80 = arith.addf %75, %79 : vector<8x128xf32>
    %cst_18 = arith.constant 0.000000e+00 : f32
    %81 = vector.broadcast %cst_18 : f32 to vector<8x128xf32>
    %82 = arith.maximumf %80, %81 : vector<8x128xf32>
    %83 = arith.maximumf %65, %82 : vector<8x128xf32>
    %84 = arith.truncf %83 : vector<8x128xf32> to vector<8x128xbf16>
    %cst_19 = arith.constant dense<0.000000e+00> : vector<8x192xf32>
    %85 = tpu.matmul %84, %2, %cst_19 {dimension_numbers = #tpu.dot_dimension_numbers<[1], [0], [0], [1], [0, 0, 1, 1], [], []>} : vector<8x128xbf16>, vector<128x192xbf16>, vector<8x192xf32> -> vector<8x192xf32>
    %86 = vector.extract_strided_slice %85 {offsets = [0, 128], sizes = [8, 64], strides = [1, 1]} : vector<8x192xf32> to vector<8x64xf32>
    %87 = arith.addf %47, %86 : vector<8x64xf32>
    %88 = vector.extract_strided_slice %85 {offsets = [0, 64], sizes = [8, 64], strides = [1, 1]} : vector<8x192xf32> to vector<8x64xf32>
    %89 = arith.addf %48, %88 : vector<8x64xf32>
    %90 = vector.extract_strided_slice %85 {offsets = [0, 0], sizes = [8, 64], strides = [1, 1]} : vector<8x192xf32> to vector<8x64xf32>
    %91 = vector.extract_strided_slice %0 {offsets = [0, 3], sizes = [8, 1], strides = [1, 1]} : vector<8x16xf32> to vector<8x1xf32>
    %92 = vector.broadcast %91 : vector<8x1xf32> to vector<8x128xf32>
    %93 = vector.broadcast %12 : vector<1x128xf32> to vector<8x128xf32>
    %94 = arith.mulf %92, %93 : vector<8x128xf32>
    %95 = arith.addf %8, %94 : vector<8x128xf32>
    %96 = vector.extract_strided_slice %0 {offsets = [0, 4], sizes = [8, 1], strides = [1, 1]} : vector<8x16xf32> to vector<8x1xf32>
    %97 = vector.broadcast %96 : vector<8x1xf32> to vector<8x128xf32>
    %98 = vector.broadcast %13 : vector<1x128xf32> to vector<8x128xf32>
    %99 = arith.mulf %97, %98 : vector<8x128xf32>
    %100 = arith.addf %95, %99 : vector<8x128xf32>
    %101 = vector.extract_strided_slice %0 {offsets = [0, 5], sizes = [8, 1], strides = [1, 1]} : vector<8x16xf32> to vector<8x1xf32>
    %102 = vector.broadcast %101 : vector<8x1xf32> to vector<8x128xf32>
    %103 = vector.broadcast %14 : vector<1x128xf32> to vector<8x128xf32>
    %104 = arith.mulf %102, %103 : vector<8x128xf32>
    %105 = arith.addf %100, %104 : vector<8x128xf32>
    %cst_20 = arith.constant 0.000000e+00 : f32
    %106 = vector.broadcast %cst_20 : f32 to vector<8x128xf32>
    %107 = arith.maximumf %105, %106 : vector<8x128xf32>
    %108 = vector.extract_strided_slice %0 {offsets = [0, 4], sizes = [8, 1], strides = [1, 1]} : vector<8x16xf32> to vector<8x1xf32>
    %109 = vector.broadcast %108 : vector<8x1xf32> to vector<8x128xf32>
    %110 = vector.broadcast %12 : vector<1x128xf32> to vector<8x128xf32>
    %111 = arith.mulf %109, %110 : vector<8x128xf32>
    %112 = arith.addf %8, %111 : vector<8x128xf32>
    %113 = vector.extract_strided_slice %0 {offsets = [0, 5], sizes = [8, 1], strides = [1, 1]} : vector<8x16xf32> to vector<8x1xf32>
    %114 = vector.broadcast %113 : vector<8x1xf32> to vector<8x128xf32>
    %115 = vector.broadcast %13 : vector<1x128xf32> to vector<8x128xf32>
    %116 = arith.mulf %114, %115 : vector<8x128xf32>
    %117 = arith.addf %112, %116 : vector<8x128xf32>
    %118 = vector.extract_strided_slice %0 {offsets = [0, 6], sizes = [8, 1], strides = [1, 1]} : vector<8x16xf32> to vector<8x1xf32>
    %119 = vector.broadcast %118 : vector<8x1xf32> to vector<8x128xf32>
    %120 = vector.broadcast %14 : vector<1x128xf32> to vector<8x128xf32>
    %121 = arith.mulf %119, %120 : vector<8x128xf32>
    %122 = arith.addf %117, %121 : vector<8x128xf32>
    %cst_21 = arith.constant 0.000000e+00 : f32
    %123 = vector.broadcast %cst_21 : f32 to vector<8x128xf32>
    %124 = arith.maximumf %122, %123 : vector<8x128xf32>
    %125 = arith.maximumf %107, %124 : vector<8x128xf32>
    %126 = arith.truncf %125 : vector<8x128xf32> to vector<8x128xbf16>
    %cst_22 = arith.constant dense<0.000000e+00> : vector<8x192xf32>
    %127 = tpu.matmul %126, %2, %cst_22 {dimension_numbers = #tpu.dot_dimension_numbers<[1], [0], [0], [1], [0, 0, 1, 1], [], []>} : vector<8x128xbf16>, vector<128x192xbf16>, vector<8x192xf32> -> vector<8x192xf32>
    %128 = vector.extract_strided_slice %127 {offsets = [0, 128], sizes = [8, 64], strides = [1, 1]} : vector<8x192xf32> to vector<8x64xf32>
    %129 = arith.addf %89, %128 : vector<8x64xf32>
    %130 = arith.maximumf %87, %129 : vector<8x64xf32>
    %131 = arith.addf %130, %11 : vector<8x64xf32>
    %cst_23 = arith.constant 0.000000e+00 : f32
    %132 = vector.broadcast %cst_23 : f32 to vector<8x64xf32>
    %133 = arith.maximumf %131, %132 : vector<8x64xf32>
    %134 = arith.truncf %133 : vector<8x64xf32> to vector<8x64xbf16>
    %c0_24 = arith.constant 0 : index
    %c0_25 = arith.constant 0 : index
    %135 = vector.load %arg11[%c0_24, %c0_25] : memref<8x256xbf16, #tpu.memory_space<vmem>>, vector<8x64xbf16>
    tpu.vector_store %arg11[%c0_24, %c0_25], %134 {strides = array<i32>} : memref<8x256xbf16, #tpu.memory_space<vmem>>, vector<8x64xbf16>,
    %136 = vector.extract_strided_slice %127 {offsets = [0, 64], sizes = [8, 64], strides = [1, 1]} : vector<8x192xf32> to vector<8x64xf32>
    %137 = arith.addf %90, %136 : vector<8x64xf32>
    %138 = vector.extract_strided_slice %127 {offsets = [0, 0], sizes = [8, 64], strides = [1, 1]} : vector<8x192xf32> to vector<8x64xf32>
    %139 = vector.extract_strided_slice %0 {offsets = [0, 5], sizes = [8, 1], strides = [1, 1]} : vector<8x16xf32> to vector<8x1xf32>
    %140 = vector.broadcast %139 : vector<8x1xf32> to vector<8x128xf32>
    %141 = vector.broadcast %12 : vector<1x128xf32> to vector<8x128xf32>
    %142 = arith.mulf %140, %141 : vector<8x128xf32>
    %143 = arith.addf %8, %142 : vector<8x128xf32>
    %144 = vector.extract_strided_slice %0 {offsets = [0, 6], sizes = [8, 1], strides = [1, 1]} : vector<8x16xf32> to vector<8x1xf32>
    %145 = vector.broadcast %144 : vector<8x1xf32> to vector<8x128xf32>
    %146 = vector.broadcast %13 : vector<1x128xf32> to vector<8x128xf32>
    %147 = arith.mulf %145, %146 : vector<8x128xf32>
    %148 = arith.addf %143, %147 : vector<8x128xf32>
    %149 = vector.extract_strided_slice %0 {offsets = [0, 7], sizes = [8, 1], strides = [1, 1]} : vector<8x16xf32> to vector<8x1xf32>
    %150 = vector.broadcast %149 : vector<8x1xf32> to vector<8x128xf32>
    %151 = vector.broadcast %14 : vector<1x128xf32> to vector<8x128xf32>
    %152 = arith.mulf %150, %151 : vector<8x128xf32>
    %153 = arith.addf %148, %152 : vector<8x128xf32>
    %cst_26 = arith.constant 0.000000e+00 : f32
    %154 = vector.broadcast %cst_26 : f32 to vector<8x128xf32>
    %155 = arith.maximumf %153, %154 : vector<8x128xf32>
    %156 = vector.extract_strided_slice %0 {offsets = [0, 6], sizes = [8, 1], strides = [1, 1]} : vector<8x16xf32> to vector<8x1xf32>
    %157 = vector.broadcast %156 : vector<8x1xf32> to vector<8x128xf32>
    %158 = vector.broadcast %12 : vector<1x128xf32> to vector<8x128xf32>
    %159 = arith.mulf %157, %158 : vector<8x128xf32>
    %160 = arith.addf %8, %159 : vector<8x128xf32>
    %161 = vector.extract_strided_slice %0 {offsets = [0, 7], sizes = [8, 1], strides = [1, 1]} : vector<8x16xf32> to vector<8x1xf32>
    %162 = vector.broadcast %161 : vector<8x1xf32> to vector<8x128xf32>
    %163 = vector.broadcast %13 : vector<1x128xf32> to vector<8x128xf32>
    %164 = arith.mulf %162, %163 : vector<8x128xf32>
    %165 = arith.addf %160, %164 : vector<8x128xf32>
    %166 = vector.extract_strided_slice %0 {offsets = [0, 8], sizes = [8, 1], strides = [1, 1]} : vector<8x16xf32> to vector<8x1xf32>
    %167 = vector.broadcast %166 : vector<8x1xf32> to vector<8x128xf32>
    %168 = vector.broadcast %14 : vector<1x128xf32> to vector<8x128xf32>
    %169 = arith.mulf %167, %168 : vector<8x128xf32>
    %170 = arith.addf %165, %169 : vector<8x128xf32>
    %cst_27 = arith.constant 0.000000e+00 : f32
    %171 = vector.broadcast %cst_27 : f32 to vector<8x128xf32>
    %172 = arith.maximumf %170, %171 : vector<8x128xf32>
    %173 = arith.maximumf %155, %172 : vector<8x128xf32>
    %174 = arith.truncf %173 : vector<8x128xf32> to vector<8x128xbf16>
    %cst_28 = arith.constant dense<0.000000e+00> : vector<8x192xf32>
    %175 = tpu.matmul %174, %2, %cst_28 {dimension_numbers = #tpu.dot_dimension_numbers<[1], [0], [0], [1], [0, 0, 1, 1], [], []>} : vector<8x128xbf16>, vector<128x192xbf16>, vector<8x192xf32> -> vector<8x192xf32>
    %176 = vector.extract_strided_slice %175 {offsets = [0, 128], sizes = [8, 64], strides = [1, 1]} : vector<8x192xf32> to vector<8x64xf32>
    %177 = arith.addf %137, %176 : vector<8x64xf32>
    %178 = vector.extract_strided_slice %175 {offsets = [0, 64], sizes = [8, 64], strides = [1, 1]} : vector<8x192xf32> to vector<8x64xf32>
    %179 = arith.addf %138, %178 : vector<8x64xf32>
    %180 = vector.extract_strided_slice %175 {offsets = [0, 0], sizes = [8, 64], strides = [1, 1]} : vector<8x192xf32> to vector<8x64xf32>
    %181 = vector.extract_strided_slice %0 {offsets = [0, 7], sizes = [8, 1], strides = [1, 1]} : vector<8x16xf32> to vector<8x1xf32>
    %182 = vector.broadcast %181 : vector<8x1xf32> to vector<8x128xf32>
    %183 = vector.broadcast %12 : vector<1x128xf32> to vector<8x128xf32>
    %184 = arith.mulf %182, %183 : vector<8x128xf32>
    %185 = arith.addf %8, %184 : vector<8x128xf32>
    %186 = vector.extract_strided_slice %0 {offsets = [0, 8], sizes = [8, 1], strides = [1, 1]} : vector<8x16xf32> to vector<8x1xf32>
    %187 = vector.broadcast %186 : vector<8x1xf32> to vector<8x128xf32>
    %188 = vector.broadcast %13 : vector<1x128xf32> to vector<8x128xf32>
    %189 = arith.mulf %187, %188 : vector<8x128xf32>
    %190 = arith.addf %185, %189 : vector<8x128xf32>
    %191 = vector.extract_strided_slice %0 {offsets = [0, 9], sizes = [8, 1], strides = [1, 1]} : vector<8x16xf32> to vector<8x1xf32>
    %192 = vector.broadcast %191 : vector<8x1xf32> to vector<8x128xf32>
    %193 = vector.broadcast %14 : vector<1x128xf32> to vector<8x128xf32>
    %194 = arith.mulf %192, %193 : vector<8x128xf32>
    %195 = arith.addf %190, %194 : vector<8x128xf32>
    %cst_29 = arith.constant 0.000000e+00 : f32
    %196 = vector.broadcast %cst_29 : f32 to vector<8x128xf32>
    %197 = arith.maximumf %195, %196 : vector<8x128xf32>
    %198 = vector.extract_strided_slice %0 {offsets = [0, 8], sizes = [8, 1], strides = [1, 1]} : vector<8x16xf32> to vector<8x1xf32>
    %199 = vector.broadcast %198 : vector<8x1xf32> to vector<8x128xf32>
    %200 = vector.broadcast %12 : vector<1x128xf32> to vector<8x128xf32>
    %201 = arith.mulf %199, %200 : vector<8x128xf32>
    %202 = arith.addf %8, %201 : vector<8x128xf32>
    %203 = vector.extract_strided_slice %0 {offsets = [0, 9], sizes = [8, 1], strides = [1, 1]} : vector<8x16xf32> to vector<8x1xf32>
    %204 = vector.broadcast %203 : vector<8x1xf32> to vector<8x128xf32>
    %205 = vector.broadcast %13 : vector<1x128xf32> to vector<8x128xf32>
    %206 = arith.mulf %204, %205 : vector<8x128xf32>
    %207 = arith.addf %202, %206 : vector<8x128xf32>
    %208 = vector.extract_strided_slice %0 {offsets = [0, 10], sizes = [8, 1], strides = [1, 1]} : vector<8x16xf32> to vector<8x1xf32>
    %209 = vector.broadcast %208 : vector<8x1xf32> to vector<8x128xf32>
    %210 = vector.broadcast %14 : vector<1x128xf32> to vector<8x128xf32>
    %211 = arith.mulf %209, %210 : vector<8x128xf32>
    %212 = arith.addf %207, %211 : vector<8x128xf32>
    %cst_30 = arith.constant 0.000000e+00 : f32
    %213 = vector.broadcast %cst_30 : f32 to vector<8x128xf32>
    %214 = arith.maximumf %212, %213 : vector<8x128xf32>
    %215 = arith.maximumf %197, %214 : vector<8x128xf32>
    %216 = arith.truncf %215 : vector<8x128xf32> to vector<8x128xbf16>
    %cst_31 = arith.constant dense<0.000000e+00> : vector<8x192xf32>
    %217 = tpu.matmul %216, %2, %cst_31 {dimension_numbers = #tpu.dot_dimension_numbers<[1], [0], [0], [1], [0, 0, 1, 1], [], []>} : vector<8x128xbf16>, vector<128x192xbf16>, vector<8x192xf32> -> vector<8x192xf32>
    %218 = vector.extract_strided_slice %217 {offsets = [0, 128], sizes = [8, 64], strides = [1, 1]} : vector<8x192xf32> to vector<8x64xf32>
    %219 = arith.addf %179, %218 : vector<8x64xf32>
    %220 = arith.maximumf %177, %219 : vector<8x64xf32>
    %221 = arith.addf %220, %11 : vector<8x64xf32>
    %cst_32 = arith.constant 0.000000e+00 : f32
    %222 = vector.broadcast %cst_32 : f32 to vector<8x64xf32>
    %223 = arith.maximumf %221, %222 : vector<8x64xf32>
    %224 = arith.truncf %223 : vector<8x64xf32> to vector<8x64xbf16>
    %c0_33 = arith.constant 0 : index
    %c64 = arith.constant 64 : index
    %225 = vector.load %arg11[%c0_33, %c64] : memref<8x256xbf16, #tpu.memory_space<vmem>>, vector<8x64xbf16>
    tpu.vector_store %arg11[%c0_33, %c64], %224 {strides = array<i32>} : memref<8x256xbf16, #tpu.memory_space<vmem>>, vector<8x64xbf16>,
    %226 = vector.extract_strided_slice %217 {offsets = [0, 64], sizes = [8, 64], strides = [1, 1]} : vector<8x192xf32> to vector<8x64xf32>
    %227 = arith.addf %180, %226 : vector<8x64xf32>
    %228 = vector.extract_strided_slice %217 {offsets = [0, 0], sizes = [8, 64], strides = [1, 1]} : vector<8x192xf32> to vector<8x64xf32>
    %229 = vector.extract_strided_slice %0 {offsets = [0, 9], sizes = [8, 1], strides = [1, 1]} : vector<8x16xf32> to vector<8x1xf32>
    %230 = vector.broadcast %229 : vector<8x1xf32> to vector<8x128xf32>
    %231 = vector.broadcast %12 : vector<1x128xf32> to vector<8x128xf32>
    %232 = arith.mulf %230, %231 : vector<8x128xf32>
    %233 = arith.addf %8, %232 : vector<8x128xf32>
    %234 = vector.extract_strided_slice %0 {offsets = [0, 10], sizes = [8, 1], strides = [1, 1]} : vector<8x16xf32> to vector<8x1xf32>
    %235 = vector.broadcast %234 : vector<8x1xf32> to vector<8x128xf32>
    %236 = vector.broadcast %13 : vector<1x128xf32> to vector<8x128xf32>
    %237 = arith.mulf %235, %236 : vector<8x128xf32>
    %238 = arith.addf %233, %237 : vector<8x128xf32>
    %239 = vector.extract_strided_slice %0 {offsets = [0, 11], sizes = [8, 1], strides = [1, 1]} : vector<8x16xf32> to vector<8x1xf32>
    %240 = vector.broadcast %239 : vector<8x1xf32> to vector<8x128xf32>
    %241 = vector.broadcast %14 : vector<1x128xf32> to vector<8x128xf32>
    %242 = arith.mulf %240, %241 : vector<8x128xf32>
    %243 = arith.addf %238, %242 : vector<8x128xf32>
    %cst_34 = arith.constant 0.000000e+00 : f32
    %244 = vector.broadcast %cst_34 : f32 to vector<8x128xf32>
    %245 = arith.maximumf %243, %244 : vector<8x128xf32>
    %246 = vector.extract_strided_slice %0 {offsets = [0, 10], sizes = [8, 1], strides = [1, 1]} : vector<8x16xf32> to vector<8x1xf32>
    %247 = vector.broadcast %246 : vector<8x1xf32> to vector<8x128xf32>
    %248 = vector.broadcast %12 : vector<1x128xf32> to vector<8x128xf32>
    %249 = arith.mulf %247, %248 : vector<8x128xf32>
    %250 = arith.addf %8, %249 : vector<8x128xf32>
    %251 = vector.extract_strided_slice %0 {offsets = [0, 11], sizes = [8, 1], strides = [1, 1]} : vector<8x16xf32> to vector<8x1xf32>
    %252 = vector.broadcast %251 : vector<8x1xf32> to vector<8x128xf32>
    %253 = vector.broadcast %13 : vector<1x128xf32> to vector<8x128xf32>
    %254 = arith.mulf %252, %253 : vector<8x128xf32>
    %255 = arith.addf %250, %254 : vector<8x128xf32>
    %256 = vector.extract_strided_slice %0 {offsets = [0, 12], sizes = [8, 1], strides = [1, 1]} : vector<8x16xf32> to vector<8x1xf32>
    %257 = vector.broadcast %256 : vector<8x1xf32> to vector<8x128xf32>
    %258 = vector.broadcast %14 : vector<1x128xf32> to vector<8x128xf32>
    %259 = arith.mulf %257, %258 : vector<8x128xf32>
    %260 = arith.addf %255, %259 : vector<8x128xf32>
    %cst_35 = arith.constant 0.000000e+00 : f32
    %261 = vector.broadcast %cst_35 : f32 to vector<8x128xf32>
    %262 = arith.maximumf %260, %261 : vector<8x128xf32>
    %263 = arith.maximumf %245, %262 : vector<8x128xf32>
    %264 = arith.truncf %263 : vector<8x128xf32> to vector<8x128xbf16>
    %cst_36 = arith.constant dense<0.000000e+00> : vector<8x192xf32>
    %265 = tpu.matmul %264, %2, %cst_36 {dimension_numbers = #tpu.dot_dimension_numbers<[1], [0], [0], [1], [0, 0, 1, 1], [], []>} : vector<8x128xbf16>, vector<128x192xbf16>, vector<8x192xf32> -> vector<8x192xf32>
    %266 = vector.extract_strided_slice %265 {offsets = [0, 128], sizes = [8, 64], strides = [1, 1]} : vector<8x192xf32> to vector<8x64xf32>
    %267 = arith.addf %227, %266 : vector<8x64xf32>
    %268 = vector.extract_strided_slice %265 {offsets = [0, 64], sizes = [8, 64], strides = [1, 1]} : vector<8x192xf32> to vector<8x64xf32>
    %269 = arith.addf %228, %268 : vector<8x64xf32>
    %270 = vector.extract_strided_slice %265 {offsets = [0, 0], sizes = [8, 64], strides = [1, 1]} : vector<8x192xf32> to vector<8x64xf32>
    %271 = vector.extract_strided_slice %0 {offsets = [0, 11], sizes = [8, 1], strides = [1, 1]} : vector<8x16xf32> to vector<8x1xf32>
    %272 = vector.broadcast %271 : vector<8x1xf32> to vector<8x128xf32>
    %273 = vector.broadcast %12 : vector<1x128xf32> to vector<8x128xf32>
    %274 = arith.mulf %272, %273 : vector<8x128xf32>
    %275 = arith.addf %8, %274 : vector<8x128xf32>
    %276 = vector.extract_strided_slice %0 {offsets = [0, 12], sizes = [8, 1], strides = [1, 1]} : vector<8x16xf32> to vector<8x1xf32>
    %277 = vector.broadcast %276 : vector<8x1xf32> to vector<8x128xf32>
    %278 = vector.broadcast %13 : vector<1x128xf32> to vector<8x128xf32>
    %279 = arith.mulf %277, %278 : vector<8x128xf32>
    %280 = arith.addf %275, %279 : vector<8x128xf32>
    %281 = vector.extract_strided_slice %0 {offsets = [0, 13], sizes = [8, 1], strides = [1, 1]} : vector<8x16xf32> to vector<8x1xf32>
    %282 = vector.broadcast %281 : vector<8x1xf32> to vector<8x128xf32>
    %283 = vector.broadcast %14 : vector<1x128xf32> to vector<8x128xf32>
    %284 = arith.mulf %282, %283 : vector<8x128xf32>
    %285 = arith.addf %280, %284 : vector<8x128xf32>
    %cst_37 = arith.constant 0.000000e+00 : f32
    %286 = vector.broadcast %cst_37 : f32 to vector<8x128xf32>
    %287 = arith.maximumf %285, %286 : vector<8x128xf32>
    %288 = vector.extract_strided_slice %0 {offsets = [0, 12], sizes = [8, 1], strides = [1, 1]} : vector<8x16xf32> to vector<8x1xf32>
    %289 = vector.broadcast %288 : vector<8x1xf32> to vector<8x128xf32>
    %290 = vector.broadcast %12 : vector<1x128xf32> to vector<8x128xf32>
    %291 = arith.mulf %289, %290 : vector<8x128xf32>
    %292 = arith.addf %8, %291 : vector<8x128xf32>
    %293 = vector.extract_strided_slice %0 {offsets = [0, 13], sizes = [8, 1], strides = [1, 1]} : vector<8x16xf32> to vector<8x1xf32>
    %294 = vector.broadcast %293 : vector<8x1xf32> to vector<8x128xf32>
    %295 = vector.broadcast %13 : vector<1x128xf32> to vector<8x128xf32>
    %296 = arith.mulf %294, %295 : vector<8x128xf32>
    %297 = arith.addf %292, %296 : vector<8x128xf32>
    %298 = vector.extract_strided_slice %0 {offsets = [0, 14], sizes = [8, 1], strides = [1, 1]} : vector<8x16xf32> to vector<8x1xf32>
    %299 = vector.broadcast %298 : vector<8x1xf32> to vector<8x128xf32>
    %300 = vector.broadcast %14 : vector<1x128xf32> to vector<8x128xf32>
    %301 = arith.mulf %299, %300 : vector<8x128xf32>
    %302 = arith.addf %297, %301 : vector<8x128xf32>
    %cst_38 = arith.constant 0.000000e+00 : f32
    %303 = vector.broadcast %cst_38 : f32 to vector<8x128xf32>
    %304 = arith.maximumf %302, %303 : vector<8x128xf32>
    %305 = arith.maximumf %287, %304 : vector<8x128xf32>
    %306 = arith.truncf %305 : vector<8x128xf32> to vector<8x128xbf16>
    %cst_39 = arith.constant dense<0.000000e+00> : vector<8x192xf32>
    %307 = tpu.matmul %306, %2, %cst_39 {dimension_numbers = #tpu.dot_dimension_numbers<[1], [0], [0], [1], [0, 0, 1, 1], [], []>} : vector<8x128xbf16>, vector<128x192xbf16>, vector<8x192xf32> -> vector<8x192xf32>
    %308 = vector.extract_strided_slice %307 {offsets = [0, 128], sizes = [8, 64], strides = [1, 1]} : vector<8x192xf32> to vector<8x64xf32>
    %309 = arith.addf %269, %308 : vector<8x64xf32>
    %310 = arith.maximumf %267, %309 : vector<8x64xf32>
    %311 = arith.addf %310, %11 : vector<8x64xf32>
    %cst_40 = arith.constant 0.000000e+00 : f32
    %312 = vector.broadcast %cst_40 : f32 to vector<8x64xf32>
    %313 = arith.maximumf %311, %312 : vector<8x64xf32>
    %314 = arith.truncf %313 : vector<8x64xf32> to vector<8x64xbf16>
    %c0_41 = arith.constant 0 : index
    %c128 = arith.constant 128 : index
    %315 = vector.load %arg11[%c0_41, %c128] : memref<8x256xbf16, #tpu.memory_space<vmem>>, vector<8x64xbf16>
    tpu.vector_store %arg11[%c0_41, %c128], %314 {strides = array<i32>} : memref<8x256xbf16, #tpu.memory_space<vmem>>, vector<8x64xbf16>,
    %316 = vector.extract_strided_slice %307 {offsets = [0, 64], sizes = [8, 64], strides = [1, 1]} : vector<8x192xf32> to vector<8x64xf32>
    %317 = arith.addf %270, %316 : vector<8x64xf32>
    %318 = vector.extract_strided_slice %307 {offsets = [0, 0], sizes = [8, 64], strides = [1, 1]} : vector<8x192xf32> to vector<8x64xf32>
    %319 = vector.extract_strided_slice %0 {offsets = [0, 13], sizes = [8, 1], strides = [1, 1]} : vector<8x16xf32> to vector<8x1xf32>
    %320 = vector.broadcast %319 : vector<8x1xf32> to vector<8x128xf32>
    %321 = vector.broadcast %12 : vector<1x128xf32> to vector<8x128xf32>
    %322 = arith.mulf %320, %321 : vector<8x128xf32>
    %323 = arith.addf %8, %322 : vector<8x128xf32>
    %324 = vector.extract_strided_slice %0 {offsets = [0, 14], sizes = [8, 1], strides = [1, 1]} : vector<8x16xf32> to vector<8x1xf32>
    %325 = vector.broadcast %324 : vector<8x1xf32> to vector<8x128xf32>
    %326 = vector.broadcast %13 : vector<1x128xf32> to vector<8x128xf32>
    %327 = arith.mulf %325, %326 : vector<8x128xf32>
    %328 = arith.addf %323, %327 : vector<8x128xf32>
    %329 = vector.extract_strided_slice %0 {offsets = [0, 15], sizes = [8, 1], strides = [1, 1]} : vector<8x16xf32> to vector<8x1xf32>
    %330 = vector.broadcast %329 : vector<8x1xf32> to vector<8x128xf32>
    %331 = vector.broadcast %14 : vector<1x128xf32> to vector<8x128xf32>
    %332 = arith.mulf %330, %331 : vector<8x128xf32>
    %333 = arith.addf %328, %332 : vector<8x128xf32>
    %cst_42 = arith.constant 0.000000e+00 : f32
    %334 = vector.broadcast %cst_42 : f32 to vector<8x128xf32>
    %335 = arith.maximumf %333, %334 : vector<8x128xf32>
    %336 = vector.extract_strided_slice %0 {offsets = [0, 14], sizes = [8, 1], strides = [1, 1]} : vector<8x16xf32> to vector<8x1xf32>
    %337 = vector.broadcast %336 : vector<8x1xf32> to vector<8x128xf32>
    %338 = vector.broadcast %12 : vector<1x128xf32> to vector<8x128xf32>
    %339 = arith.mulf %337, %338 : vector<8x128xf32>
    %340 = arith.addf %8, %339 : vector<8x128xf32>
    %341 = vector.extract_strided_slice %0 {offsets = [0, 15], sizes = [8, 1], strides = [1, 1]} : vector<8x16xf32> to vector<8x1xf32>
    %342 = vector.broadcast %341 : vector<8x1xf32> to vector<8x128xf32>
    %343 = vector.broadcast %13 : vector<1x128xf32> to vector<8x128xf32>
    %344 = arith.mulf %342, %343 : vector<8x128xf32>
    %345 = arith.addf %340, %344 : vector<8x128xf32>
    %cst_43 = arith.constant 0.000000e+00 : f32
    %346 = vector.broadcast %cst_43 : f32 to vector<8x128xf32>
    %347 = arith.maximumf %345, %346 : vector<8x128xf32>
    %348 = arith.maximumf %335, %347 : vector<8x128xf32>
    %349 = arith.truncf %348 : vector<8x128xf32> to vector<8x128xbf16>
    %cst_44 = arith.constant dense<0.000000e+00> : vector<8x192xf32>
    %350 = tpu.matmul %349, %2, %cst_44 {dimension_numbers = #tpu.dot_dimension_numbers<[1], [0], [0], [1], [0, 0, 1, 1], [], []>} : vector<8x128xbf16>, vector<128x192xbf16>, vector<8x192xf32> -> vector<8x192xf32>
    %351 = vector.extract_strided_slice %350 {offsets = [0, 128], sizes = [8, 64], strides = [1, 1]} : vector<8x192xf32> to vector<8x64xf32>
    %352 = arith.addf %317, %351 : vector<8x64xf32>
    %353 = vector.extract_strided_slice %350 {offsets = [0, 64], sizes = [8, 64], strides = [1, 1]} : vector<8x192xf32> to vector<8x64xf32>
    %354 = arith.addf %318, %353 : vector<8x64xf32>
    %355 = arith.maximumf %352, %354 : vector<8x64xf32>
    %356 = arith.addf %355, %11 : vector<8x64xf32>
    %cst_45 = arith.constant 0.000000e+00 : f32
    %357 = vector.broadcast %cst_45 : f32 to vector<8x64xf32>
    %358 = arith.maximumf %356, %357 : vector<8x64xf32>
    %359 = arith.truncf %358 : vector<8x64xf32> to vector<8x64xbf16>
    %c0_46 = arith.constant 0 : index
    %c192 = arith.constant 192 : index
    %360 = vector.load %arg11[%c0_46, %c192] : memref<8x256xbf16, #tpu.memory_space<vmem>>, vector<8x64xbf16>
    tpu.vector_store %arg11[%c0_46, %c192], %359 {strides = array<i32>} : memref<8x256xbf16, #tpu.memory_space<vmem>>, vector<8x64xbf16>,
    %c0_47 = arith.constant 0 : index
    %c0_48 = arith.constant 0 : index
    %361 = vector.load %arg11[%c0_47, %c0_48] : memref<8x256xbf16, #tpu.memory_space<vmem>>, vector<8x256xbf16>
    %c0_49 = arith.constant 0 : index
    %c0_50 = arith.constant 0 : index
    %362 = vector.load %arg6[%c0_49, %c0_50] : memref<256x64xbf16, #tpu.memory_space<vmem>>, vector<256x64xbf16>
    %cst_51 = arith.constant dense<0.000000e+00> : vector<8x64xf32>
    %363 = tpu.matmul %361, %362, %cst_51 {dimension_numbers = #tpu.dot_dimension_numbers<[1], [0], [0], [1], [0, 0, 1, 1], [], []>} : vector<8x256xbf16>, vector<256x64xbf16>, vector<8x64xf32> -> vector<8x64xf32>
    %364 = vector.broadcast %3 : vector<1x64xf32> to vector<8x64xf32>
    %365 = arith.addf %363, %364 : vector<8x64xf32>
    %cst_52 = arith.constant 0.000000e+00 : f32
    %366 = vector.broadcast %cst_52 : f32 to vector<8x64xf32>
    %367 = arith.maximumf %365, %366 : vector<8x64xf32>
    %368 = arith.truncf %367 : vector<8x64xf32> to vector<8x64xbf16>
    %cst_53 = arith.constant dense<0.000000e+00> : vector<8x128xf32>
    %369 = tpu.matmul %368, %4, %cst_53 {dimension_numbers = #tpu.dot_dimension_numbers<[1], [0], [0], [1], [0, 0, 1, 1], [], []>} : vector<8x64xbf16>, vector<64x128xbf16>, vector<8x128xf32> -> vector<8x128xf32>
    %370 = vector.broadcast %5 : vector<1x128xf32> to vector<8x128xf32>
    %371 = arith.addf %369, %370 : vector<8x128xf32>
    %c0_54 = arith.constant 0 : index
    %c0_55 = arith.constant 0 : index
    %372 = vector.load %arg10[%c0_54, %c0_55] : memref<8x128xf32, #tpu.memory_space<vmem>>, vector<8x128xf32>
    tpu.vector_store %arg10[%c0_54, %c0_55], %371 {strides = array<i32>} : memref<8x128xf32, #tpu.memory_space<vmem>>, vector<8x128xf32>,
    return
  }
  func.func @transform_0(%arg0: i32) -> (i32, i32) {
    %c0_i32 = arith.constant 0 : i32
    %c0_i32_0 = arith.constant 0 : i32
    return %arg0, %c0_i32 : i32, i32
  }
  func.func @transform_1(%arg0: i32) -> (i32, i32) {
    %c0_i32 = arith.constant 0 : i32
    %c0_i32_0 = arith.constant 0 : i32
    %c0_i32_1 = arith.constant 0 : i32
    return %c0_i32, %c0_i32_0 : i32, i32
  }
  func.func @transform_2(%arg0: i32) -> (i32, i32) {
    %c0_i32 = arith.constant 0 : i32
    %c0_i32_0 = arith.constant 0 : i32
    %c0_i32_1 = arith.constant 0 : i32
    return %c0_i32, %c0_i32_0 : i32, i32
  }
  func.func @transform_3(%arg0: i32) -> (i32, i32) {
    %c0_i32 = arith.constant 0 : i32
    %c0_i32_0 = arith.constant 0 : i32
    %c0_i32_1 = arith.constant 0 : i32
    return %c0_i32, %c0_i32_0 : i32, i32
  }
  func.func @transform_4(%arg0: i32) -> (i32, i32) {
    %c0_i32 = arith.constant 0 : i32
    %c0_i32_0 = arith.constant 0 : i32
    %c0_i32_1 = arith.constant 0 : i32
    return %c0_i32, %c0_i32_0 : i32, i32
  }
  func.func @transform_5(%arg0: i32) -> (i32, i32) {
    %c0_i32 = arith.constant 0 : i32
    %c0_i32_0 = arith.constant 0 : i32
    %c0_i32_1 = arith.constant 0 : i32
    return %c0_i32, %c0_i32_0 : i32, i32
  }
  func.func @transform_6(%arg0: i32) -> (i32, i32) {
    %c0_i32 = arith.constant 0 : i32
    %c0_i32_0 = arith.constant 0 : i32
    %c0_i32_1 = arith.constant 0 : i32
    return %c0_i32, %c0_i32_0 : i32, i32
  }
  func.func @transform_7(%arg0: i32) -> (i32, i32) {
    %c0_i32 = arith.constant 0 : i32
    %c0_i32_0 = arith.constant 0 : i32
    %c0_i32_1 = arith.constant 0 : i32
    return %c0_i32, %c0_i32_0 : i32, i32
  }
  func.func @transform_8(%arg0: i32) -> (i32, i32) {
    %c0_i32 = arith.constant 0 : i32
    %c0_i32_0 = arith.constant 0 : i32
    %c0_i32_1 = arith.constant 0 : i32
    return %c0_i32, %c0_i32_0 : i32, i32
  }
  func.func @transform_9(%arg0: i32) -> (i32, i32) {
    %c0_i32 = arith.constant 0 : i32
    %c0_i32_0 = arith.constant 0 : i32
    return %arg0, %c0_i32 : i32, i32
  }
}

</mosaic_0001>

<llo_original>
// kernel: cnn1d_forward.1
$region0: #{cnn1d_forward.1}
  #allocation0 [shape = 'u32[]', space=smem, size = 0x4, offset = 0x4, fixed_abs, tag = 'smem constant byte address 0x4 - core index']
  #allocation1 [shape = 'u32[72,128]{1,0:T(1,128)}', space=vmem, size = 0x9000, scoped, tag = 'internal scratch']
  #allocation2 [shape = 'bf16[8,256]{1,0:T(8,128)(2,1)}', space=vmem, size = 0x1000, scoped, tag = 'scratch operand']
  %s0 = inlined_call_operand.vmem [shape: f32[8,16], index: 0, kind: input, shape index: {}]
  %s1 = inlined_call_operand.vmem [shape: f32[3,128], index: 1, kind: input, shape index: {}]
  %s2 = inlined_call_operand.vmem [shape: f32[1,128], index: 2, kind: input, shape index: {}]
  %s3 = inlined_call_operand.vmem [shape: bf16[128,192], index: 3, kind: input, shape index: {}]
  %s4 = inlined_call_operand.vmem [shape: f32[1,64], index: 4, kind: input, shape index: {}]
  %s5 = inlined_call_operand.vmem [shape: bf16[256,64], index: 5, kind: input, shape index: {}]
  %s6 = inlined_call_operand.vmem [shape: f32[1,64], index: 6, kind: input, shape index: {}]
  %s7 = inlined_call_operand.vmem [shape: bf16[64,128], index: 7, kind: input, shape index: {}]
  %s8 = inlined_call_operand.vmem [shape: f32[1,128], index: 8, kind: input, shape index: {}]
  %s9 = inlined_call_operand.vmem [shape: f32[8,128], index: 9, kind: output, shape index: {}]
  %s10 = sld [smem:[#allocation0]]
  $region46: #{cnn1d_forward.1} parent=0
    _
  %s12 = ssub.s32 1, %s10
  %s13 = scalar_select 0, %s12, %s10
  // Predicated region
  $region2: #{cnn1d_forward.1} parent=0 // pred_check
    _
  $region3: #{cnn1d_forward.1} parent=0 // pred_check_branch
    %15 = sbr.rel (0) target = $region5
  $region4: #{cnn1d_forward.1} parent=0 // pred_region
    _
  $region5: #{cnn1d_forward.1} parent=0 // pred_fallthru
    _
  // Predicated region
  $region6: #{cnn1d_forward.1} parent=0 // pred_check
    _
  $region7: #{cnn1d_forward.1} parent=0 // pred_check_branch
    %17 = sbr.rel (0) target = $region9
  $region8: #{cnn1d_forward.1} parent=0 // pred_region
    _
  $region9: #{cnn1d_forward.1} parent=0 // pred_fallthru
    _
  // Predicated region
  $region10: #{cnn1d_forward.1} parent=0 // pred_check
    _
  $region11: #{cnn1d_forward.1} parent=0 // pred_check_branch
    %19 = sbr.rel (0) target = $region13
  $region12: #{cnn1d_forward.1} parent=0 // pred_region
    _
  $region13: #{cnn1d_forward.1} parent=0 // pred_fallthru
    _
  // Predicated region
  $region14: #{cnn1d_forward.1} parent=0 // pred_check
    _
  $region15: #{cnn1d_forward.1} parent=0 // pred_check_branch
    %21 = sbr.rel (0) target = $region17
  $region16: #{cnn1d_forward.1} parent=0 // pred_region
    _
  $region17: #{cnn1d_forward.1} parent=0 // pred_fallthru
    _
  // Predicated region
  $region18: #{cnn1d_forward.1} parent=0 // pred_check
    _
  $region19: #{cnn1d_forward.1} parent=0 // pred_check_branch
    %23 = sbr.rel (0) target = $region21
  $region20: #{cnn1d_forward.1} parent=0 // pred_region
    _
  $region21: #{cnn1d_forward.1} parent=0 // pred_fallthru
    _
  // Predicated region
  $region22: #{cnn1d_forward.1} parent=0 // pred_check
    _
  $region23: #{cnn1d_forward.1} parent=0 // pred_check_branch
    %25 = sbr.rel (0) target = $region25
  $region24: #{cnn1d_forward.1} parent=0 // pred_region
    _
  $region25: #{cnn1d_forward.1} parent=0 // pred_fallthru
    _
  // Predicated region
  $region26: #{cnn1d_forward.1} parent=0 // pred_check
    _
  $region27: #{cnn1d_forward.1} parent=0 // pred_check_branch
    %27 = sbr.rel (0) target = $region29
  $region28: #{cnn1d_forward.1} parent=0 // pred_region
    _
  $region29: #{cnn1d_forward.1} parent=0 // pred_fallthru
    _
  // Predicated region
  $region30: #{cnn1d_forward.1} parent=0 // pred_check
    _
  $region31: #{cnn1d_forward.1} parent=0 // pred_check_branch
    %29 = sbr.rel (0) target = $region33
  $region32: #{cnn1d_forward.1} parent=0 // pred_region
    _
  $region33: #{cnn1d_forward.1} parent=0 // pred_fallthru
    _
  // Predicated region
  $region34: #{cnn1d_forward.1} parent=0 // pred_check
    _
  $region35: #{cnn1d_forward.1} parent=0 // pred_check_branch
    %31 = sbr.rel (0) target = $region37
  $region36: #{cnn1d_forward.1} parent=0 // pred_region
    _
  $region37: #{cnn1d_forward.1} parent=0 // pred_fallthru
    _
  %v33 = vld [vmem:[%s0] sm:$0xff]
  %v34 = vld [vmem:[%s1] sm:$0x7]
  %v35 = vld [vmem:[%s3] sm:$0xff]
  %v36 = vld [vmem:[%s3 + $0x8] sm:$0xff]
  %v37 = vld [vmem:[%s3 + $0x10] sm:$0xff]
  %v38 = vld [vmem:[%s3 + $0x18] sm:$0xff]
  %v39 = vld [vmem:[%s3 + $0x20] sm:$0xff]
  %v40 = vld [vmem:[%s3 + $0x28] sm:$0xff]
  %v41 = vld [vmem:[%s3 + $0x30] sm:$0xff]
  %v42 = vld [vmem:[%s3 + $0x38] sm:$0xff]
  %v43 = vld [vmem:[%s3 + $0x40] sm:$0xff]
  %v44 = vld [vmem:[%s3 + $0x48] sm:$0xff]
  %v45 = vld [vmem:[%s3 + $0x50] sm:$0xff]
  %v46 = vld [vmem:[%s3 + $0x58] sm:$0xff]
  %v47 = vld [vmem:[%s3 + $0x60] sm:$0xff]
  %v48 = vld [vmem:[%s3 + $0x68] sm:$0xff]
  %v49 = vld [vmem:[%s3 + $0x70] sm:$0xff]
  %v50 = vld [vmem:[%s3 + $0x78] sm:$0xff]
  %v51 = vld [vmem:[%s6] sm:$0x1]
  %v52 = vld [vmem:[%s7] sm:$0xf]
  %v53 = vld [vmem:[%s7 + $0x4] sm:$0xf]
  %v54 = vld [vmem:[%s7 + $0x8] sm:$0xf]
  %v55 = vld [vmem:[%s7 + $0xc] sm:$0xf]
  %v56 = vld [vmem:[%s7 + $0x10] sm:$0xf]
  %v57 = vld [vmem:[%s7 + $0x14] sm:$0xf]
  %v58 = vld [vmem:[%s7 + $0x18] sm:$0xf]
  %v59 = vld [vmem:[%s7 + $0x1c] sm:$0xf]
  %v60 = vld [vmem:[%s8] sm:$0x1]
  %v61 = vld [vmem:[%s2] sm:$0x1]
  %v63 = vperm.slane %v61, 0
  %v65 = vld [vmem:[%s4] sm:$0x1]
  %v67 = vperm.slane %v65, 0
  %70 = vset.pattern.permute.xlu0 0
  %71 = vperm.xlu0 %70, %v33
  %v72 = vpop.permute.xlu0 %71
  %v74 = vperm.slane %v34, 1
  %v75 = vmul.f32 %v72, %v74
  %v76 = vadd.f32 %v63, %v75
  %77 = vset.pattern.permute.xlu0 1
  %78 = vperm.xlu0 %77, %v33
  %v79 = vpop.permute.xlu0 %78
  %v81 = vperm.slane %v34, 2
  %v82 = vmul.f32 %v79, %v81
  %v83 = vadd.f32 %v76, %v82
  %v84 = vmax.f32 %v83, 0.0
  %v85 = vperm.slane %v34, 0
  %v86 = vmul.f32 %v72, %v85
  %v87 = vadd.f32 %v63, %v86
  %v88 = vmul.f32 %v79, %v74
  %v89 = vadd.f32 %v87, %v88
  %90 = vset.pattern.permute.xlu0 2
  %91 = vperm.xlu0 %90, %v33
  %v92 = vpop.permute.xlu0 %91
  %v94 = vmul.f32 %v92, %v81
  %v95 = vadd.f32 %v89, %v94
  %v96 = vmax.f32 %v95, 0.0
  %v97 = vmax.f32 %v84, %v96
  %v98 = vpack.c.bf16 %v97, %v97
  %v115 = vunpack.c.l.b16 %v35
  %v116 = vunpack.c.l.b16 %v36
  %v117 = vunpack.c.l.b16 %v37
  %v118 = vunpack.c.l.b16 %v38
  %v119 = vunpack.c.l.b16 %v39
  %v120 = vunpack.c.l.b16 %v40
  %v121 = vunpack.c.l.b16 %v41
  %v122 = vunpack.c.l.b16 %v42
  %v123 = vunpack.c.l.b16 %v43
  %v124 = vunpack.c.l.b16 %v44
  %v125 = vunpack.c.l.b16 %v45
  %v126 = vunpack.c.l.b16 %v46
  %v127 = vunpack.c.l.b16 %v47
  %v128 = vunpack.c.l.b16 %v48
  %v129 = vunpack.c.l.b16 %v49
  %v130 = vunpack.c.l.b16 %v50
  %v131 = vpack.c.b16 %v116, %v115
  %v132 = vpack.c.b16 %v118, %v117
  %v133 = vpack.c.b16 %v120, %v119
  %v134 = vpack.c.b16 %v122, %v121
  %v135 = vpack.c.b16 %v124, %v123
  %v136 = vpack.c.b16 %v126, %v125
  %v137 = vpack.c.b16 %v128, %v127
  %v138 = vpack.c.b16 %v130, %v129
  %147 = vmatpush.bf16.msra.mxu0 %v138
  %148 = vmatpush.bf16.msra.mxu0 %v137
  %149 = vmatpush.bf16.msra.mxu0 %v136
  %150 = vmatpush.bf16.msra.mxu0 %v135
  %151 = vmatpush.bf16.msra.mxu0 %v134
  %152 = vmatpush.bf16.msra.mxu0 %v133
  %153 = vmatpush.bf16.msra.mxu0 %v132
  %154 = vmatpush.bf16.msra.mxu0 %v131
  %155 = vmatmul.bf16.gmra.mxu0 %v98
  %v156 = vpop.f32.mrf.mxu0
  %v157 = vadd.f32 0.0, %v156
  %v158 = vpop.f32.mrf.mxu0
  %159 = vdwg.mxu0
  %v160 = vmul.f32 %v79, %v85
  %v161 = vadd.f32 %v63, %v160
  %v162 = vmul.f32 %v92, %v74
  %v163 = vadd.f32 %v161, %v162
  %164 = vset.pattern.permute.xlu0 3
  %165 = vperm.xlu0 %164, %v33
  %v166 = vpop.permute.xlu0 %165
  %v168 = vmul.f32 %v166, %v81
  %v169 = vadd.f32 %v163, %v168
  %v170 = vmax.f32 %v169, 0.0
  %v171 = vmul.f32 %v92, %v85
  %v172 = vadd.f32 %v63, %v171
  %v173 = vmul.f32 %v166, %v74
  %v174 = vadd.f32 %v172, %v173
  %175 = vset.pattern.permute.xlu0 4
  %176 = vperm.xlu0 %175, %v33
  %v177 = vpop.permute.xlu0 %176
  %v179 = vmul.f32 %v177, %v81
  %v180 = vadd.f32 %v174, %v179
  %v181 = vmax.f32 %v180, 0.0
  %v182 = vmax.f32 %v170, %v181
  %v183 = vpack.c.bf16 %v182, %v182
  %v184 = vunpack.c.h.b16 %v35
  %v185 = vunpack.c.h.b16 %v36
  %v186 = vunpack.c.h.b16 %v37
  %v187 = vunpack.c.h.b16 %v38
  %v188 = vunpack.c.h.b16 %v39
  %v189 = vunpack.c.h.b16 %v40
  %v190 = vunpack.c.h.b16 %v41
  %v191 = vunpack.c.h.b16 %v42
  %v192 = vunpack.c.h.b16 %v43
  %v193 = vunpack.c.h.b16 %v44
  %v194 = vunpack.c.h.b16 %v45
  %v195 = vunpack.c.h.b16 %v46
  %v196 = vunpack.c.h.b16 %v47
  %v197 = vunpack.c.h.b16 %v48
  %v198 = vunpack.c.h.b16 %v49
  %v199 = vunpack.c.h.b16 %v50
  %v200 = vpack.c.b16 %v185, %v184
  %v201 = vpack.c.b16 %v187, %v186
  %v202 = vpack.c.b16 %v189, %v188
  %v203 = vpack.c.b16 %v191, %v190
  %v204 = vpack.c.b16 %v193, %v192
  %v205 = vpack.c.b16 %v195, %v194
  %v206 = vpack.c.b16 %v197, %v196
  %v207 = vpack.c.b16 %v199, %v198
  %216 = vmatpush.bf16.msra.mxu0 %v138
  %217 = vmatpush.bf16.msra.mxu0 %v137
  %218 = vmatpush.bf16.msra.mxu0 %v136
  %219 = vmatpush.bf16.msra.mxu0 %v135
  %220 = vmatpush.bf16.msra.mxu0 %v134
  %221 = vmatpush.bf16.msra.mxu0 %v133
  %222 = vmatpush.bf16.msra.mxu0 %v132
  %223 = vmatpush.bf16.msra.mxu0 %v131
  %224 = vmatmul.bf16.gmra.mxu0 %v183
  %v225 = vpop.f32.mrf.mxu0
  %v226 = vadd.f32 0.0, %v225
  %v227 = vpop.f32.mrf.mxu0
  %228 = vdwg.mxu0
  %229 = vmatpush.bf16.msra.mxu0 %v207
  %230 = vmatpush.bf16.msra.mxu0 %v206
  %231 = vmatpush.bf16.msra.mxu0 %v205
  %232 = vmatpush.bf16.msra.mxu0 %v204
  %233 = vmatpush.bf16.msra.mxu0 %v203
  %234 = vmatpush.bf16.msra.mxu0 %v202
  %235 = vmatpush.bf16.msra.mxu0 %v201
  %236 = vmatpush.bf16.msra.mxu0 %v200
  %237 = vmatmul.bf16.gmra.mxu0 %v183
  %v238 = vpop.f32.mrf.mxu0
  %v239 = vadd.f32 0.0, %v238
  %v240 = vpop.f32.mrf.mxu0
  %241 = vdwg.mxu0
  %243 = vrot.lane.b32.xlu0 %v239, 64
  %v244 = vpop.permute.xlu0 %243
  %v246 = vadd.f32 %v157, %v244
  %248 = vrot.lane.b32.xlu0 %v226, 64
  %v249 = vpop.permute.xlu0 %248
  %v251 = vadd.f32 %v157, %v249
  %v252 = vmul.f32 %v166, %v85
  %v253 = vadd.f32 %v63, %v252
  %v254 = vmul.f32 %v177, %v74
  %v255 = vadd.f32 %v253, %v254
  %256 = vset.pattern.permute.xlu0 5
  %257 = vperm.xlu0 %256, %v33
  %v258 = vpop.permute.xlu0 %257
  %v260 = vmul.f32 %v258, %v81
  %v261 = vadd.f32 %v255, %v260
  %v262 = vmax.f32 %v261, 0.0
  %v263 = vmul.f32 %v177, %v85
  %v264 = vadd.f32 %v63, %v263
  %v265 = vmul.f32 %v258, %v74
  %v266 = vadd.f32 %v264, %v265
  %267 = vset.pattern.permute.xlu0 6
  %268 = vperm.xlu0 %267, %v33
  %v269 = vpop.permute.xlu0 %268
  %v271 = vmul.f32 %v269, %v81
  %v272 = vadd.f32 %v266, %v271
  %v273 = vmax.f32 %v272, 0.0
  %v274 = vmax.f32 %v262, %v273
  %v275 = vpack.c.bf16 %v274, %v274
  %276 = vmatpush.bf16.msra.mxu0 %v138
  %277 = vmatpush.bf16.msra.mxu0 %v137
  %278 = vmatpush.bf16.msra.mxu0 %v136
  %279 = vmatpush.bf16.msra.mxu0 %v135
  %280 = vmatpush.bf16.msra.mxu0 %v134
  %281 = vmatpush.bf16.msra.mxu0 %v133
  %282 = vmatpush.bf16.msra.mxu0 %v132
  %283 = vmatpush.bf16.msra.mxu0 %v131
  %284 = vmatmul.bf16.gmra.mxu0 %v275
  %v285 = vpop.f32.mrf.mxu0
  %v286 = vadd.f32 0.0, %v285
  %v287 = vpop.f32.mrf.mxu0
  %288 = vdwg.mxu0
  %289 = vmatpush.bf16.msra.mxu0 %v207
  %290 = vmatpush.bf16.msra.mxu0 %v206
  %291 = vmatpush.bf16.msra.mxu0 %v205
  %292 = vmatpush.bf16.msra.mxu0 %v204
  %293 = vmatpush.bf16.msra.mxu0 %v203
  %294 = vmatpush.bf16.msra.mxu0 %v202
  %295 = vmatpush.bf16.msra.mxu0 %v201
  %296 = vmatpush.bf16.msra.mxu0 %v200
  %297 = vmatmul.bf16.gmra.mxu0 %v275
  %v298 = vpop.f32.mrf.mxu0
  %v299 = vadd.f32 0.0, %v298
  %v300 = vpop.f32.mrf.mxu0
  %301 = vdwg.mxu0
  %v302 = vadd.f32 %v251, %v299
  %304 = vrot.lane.b32.xlu0 %v302, 64
  %v305 = vpop.permute.xlu0 %304
  %v307 = vmax.f32 %v246, %v305
  %308 = vrot.lane.b32.xlu0 %v67, 64
  %v309 = vpop.permute.xlu0 %308
  %v311 = vadd.f32 %v307, %v309
  %v312 = vmax.f32 %v311, 0.0
  %v313 = vpack.c.bf16 %v312, %v312
  %315 = vrot.lane.b32.xlu0 %v313, 64
  %v316 = vpop.permute.xlu0 %315
  %vm318 = vcmask 519168
  %319 = vst.msk [vmem:[#allocation2] sm:$0xf] %vm318, %v316
  %321 = vrot.lane.b32.xlu0 %v286, 64
  %v322 = vpop.permute.xlu0 %321
  %v324 = vadd.f32 %v226, %v322
  %v325 = vmul.f32 %v258, %v85
  %v326 = vadd.f32 %v63, %v325
  %v327 = vmul.f32 %v269, %v74
  %v328 = vadd.f32 %v326, %v327
  %329 = vset.pattern.permute.xlu0 7
  %330 = vperm.xlu0 %329, %v33
  %v331 = vpop.permute.xlu0 %330
  %v333 = vmul.f32 %v331, %v81
  %v334 = vadd.f32 %v328, %v333
  %v335 = vmax.f32 %v334, 0.0
  %v336 = vmul.f32 %v269, %v85
  %v337 = vadd.f32 %v63, %v336
  %v338 = vmul.f32 %v331, %v74
  %v339 = vadd.f32 %v337, %v338
  %340 = vset.pattern.permute.xlu0 8
  %341 = vperm.xlu0 %340, %v33
  %v342 = vpop.permute.xlu0 %341
  %v344 = vmul.f32 %v342, %v81
  %v345 = vadd.f32 %v339, %v344
  %v346 = vmax.f32 %v345, 0.0
  %v347 = vmax.f32 %v335, %v346
  %v348 = vpack.c.bf16 %v347, %v347
  %349 = vmatpush.bf16.msra.mxu0 %v138
  %350 = vmatpush.bf16.msra.mxu0 %v137
  %351 = vmatpush.bf16.msra.mxu0 %v136
  %352 = vmatpush.bf16.msra.mxu0 %v135
  %353 = vmatpush.bf16.msra.mxu0 %v134
  %354 = vmatpush.bf16.msra.mxu0 %v133
  %355 = vmatpush.bf16.msra.mxu0 %v132
  %356 = vmatpush.bf16.msra.mxu0 %v131
  %357 = vmatmul.bf16.gmra.mxu0 %v348
  %v358 = vpop.f32.mrf.mxu0
  %v359 = vadd.f32 0.0, %v358
  %v360 = vpop.f32.mrf.mxu0
  %361 = vdwg.mxu0
  %362 = vmatpush.bf16.msra.mxu0 %v207
  %363 = vmatpush.bf16.msra.mxu0 %v206
  %364 = vmatpush.bf16.msra.mxu0 %v205
  %365 = vmatpush.bf16.msra.mxu0 %v204
  %366 = vmatpush.bf16.msra.mxu0 %v203
  %367 = vmatpush.bf16.msra.mxu0 %v202
  %368 = vmatpush.bf16.msra.mxu0 %v201
  %369 = vmatpush.bf16.msra.mxu0 %v200
  %370 = vmatmul.bf16.gmra.mxu0 %v348
  %v371 = vpop.f32.mrf.mxu0
  %v372 = vadd.f32 0.0, %v371
  %v373 = vpop.f32.mrf.mxu0
  %374 = vdwg.mxu0
  %v375 = vadd.f32 %v324, %v372
  %377 = vrot.lane.b32.xlu0 %v359, 64
  %v378 = vpop.permute.xlu0 %377
  %v380 = vadd.f32 %v286, %v378
  %v381 = vmul.f32 %v331, %v85
  %v382 = vadd.f32 %v63, %v381
  %v383 = vmul.f32 %v342, %v74
  %v384 = vadd.f32 %v382, %v383
  %385 = vset.pattern.permute.xlu0 9
  %386 = vperm.xlu0 %385, %v33
  %v387 = vpop.permute.xlu0 %386
  %v389 = vmul.f32 %v387, %v81
  %v390 = vadd.f32 %v384, %v389
  %v391 = vmax.f32 %v390, 0.0
  %v392 = vmul.f32 %v342, %v85
  %v393 = vadd.f32 %v63, %v392
  %v394 = vmul.f32 %v387, %v74
  %v395 = vadd.f32 %v393, %v394
  %396 = vset.pattern.permute.xlu0 10
  %397 = vperm.xlu0 %396, %v33
  %v398 = vpop.permute.xlu0 %397
  %v400 = vmul.f32 %v398, %v81
  %v401 = vadd.f32 %v395, %v400
  %v402 = vmax.f32 %v401, 0.0
  %v403 = vmax.f32 %v391, %v402
  %v404 = vpack.c.bf16 %v403, %v403
  %405 = vmatpush.bf16.msra.mxu0 %v138
  %406 = vmatpush.bf16.msra.mxu0 %v137
  %407 = vmatpush.bf16.msra.mxu0 %v136
  %408 = vmatpush.bf16.msra.mxu0 %v135
  %409 = vmatpush.bf16.msra.mxu0 %v134
  %410 = vmatpush.bf16.msra.mxu0 %v133
  %411 = vmatpush.bf16.msra.mxu0 %v132
  %412 = vmatpush.bf16.msra.mxu0 %v131
  %413 = vmatmul.bf16.gmra.mxu0 %v404
  %v414 = vpop.f32.mrf.mxu0
  %v415 = vadd.f32 0.0, %v414
  %v416 = vpop.f32.mrf.mxu0
  %417 = vdwg.mxu0
  %418 = vmatpush.bf16.msra.mxu0 %v207
  %419 = vmatpush.bf16.msra.mxu0 %v206
  %420 = vmatpush.bf16.msra.mxu0 %v205
  %421 = vmatpush.bf16.msra.mxu0 %v204
  %422 = vmatpush.bf16.msra.mxu0 %v203
  %423 = vmatpush.bf16.msra.mxu0 %v202
  %424 = vmatpush.bf16.msra.mxu0 %v201
  %425 = vmatpush.bf16.msra.mxu0 %v200
  %426 = vmatmul.bf16.gmra.mxu0 %v404
  %v427 = vpop.f32.mrf.mxu0
  %v428 = vadd.f32 0.0, %v427
  %v429 = vpop.f32.mrf.mxu0
  %430 = vdwg.mxu0
  %v431 = vadd.f32 %v380, %v428
  %v432 = vmax.f32 %v375, %v431
  %v433 = vadd.f32 %v432, %v67
  %v434 = vmax.f32 %v433, 0.0
  %v435 = vpack.c.bf16 %v434, %v434
  %437 = vrot.lane.b32.xlu0 %v435, 64
  %v438 = vpop.permute.xlu0 %437
  %vm440 = vcmask 1043968
  %441 = vst.msk [vmem:[#allocation2] sm:$0xf] %vm440, %v438
  %443 = vrot.lane.b32.xlu0 %v415, 64
  %v444 = vpop.permute.xlu0 %443
  %v446 = vadd.f32 %v359, %v444
  %v447 = vmul.f32 %v387, %v85
  %v448 = vadd.f32 %v63, %v447
  %v449 = vmul.f32 %v398, %v74
  %v450 = vadd.f32 %v448, %v449
  %451 = vset.pattern.permute.xlu0 11
  %452 = vperm.xlu0 %451, %v33
  %v453 = vpop.permute.xlu0 %452
  %v455 = vmul.f32 %v453, %v81
  %v456 = vadd.f32 %v450, %v455
  %v457 = vmax.f32 %v456, 0.0
  %v458 = vmul.f32 %v398, %v85
  %v459 = vadd.f32 %v63, %v458
  %v460 = vmul.f32 %v453, %v74
  %v461 = vadd.f32 %v459, %v460
  %462 = vset.pattern.permute.xlu0 12
  %463 = vperm.xlu0 %462, %v33
  %v464 = vpop.permute.xlu0 %463
  %v466 = vmul.f32 %v464, %v81
  %v467 = vadd.f32 %v461, %v466
  %v468 = vmax.f32 %v467, 0.0
  %v469 = vmax.f32 %v457, %v468
  %v470 = vpack.c.bf16 %v469, %v469
  %471 = vmatpush.bf16.msra.mxu0 %v138
  %472 = vmatpush.bf16.msra.mxu0 %v137
  %473 = vmatpush.bf16.msra.mxu0 %v136
  %474 = vmatpush.bf16.msra.mxu0 %v135
  %475 = vmatpush.bf16.msra.mxu0 %v134
  %476 = vmatpush.bf16.msra.mxu0 %v133
  %477 = vmatpush.bf16.msra.mxu0 %v132
  %478 = vmatpush.bf16.msra.mxu0 %v131
  %479 = vmatmul.bf16.gmra.mxu0 %v470
  %v480 = vpop.f32.mrf.mxu0
  %v481 = vadd.f32 0.0, %v480
  %v482 = vpop.f32.mrf.mxu0
  %483 = vdwg.mxu0
  %484 = vmatpush.bf16.msra.mxu0 %v207
  %485 = vmatpush.bf16.msra.mxu0 %v206
  %486 = vmatpush.bf16.msra.mxu0 %v205
  %487 = vmatpush.bf16.msra.mxu0 %v204
  %488 = vmatpush.bf16.msra.mxu0 %v203
  %489 = vmatpush.bf16.msra.mxu0 %v202
  %490 = vmatpush.bf16.msra.mxu0 %v201
  %491 = vmatpush.bf16.msra.mxu0 %v200
  %492 = vmatmul.bf16.gmra.mxu0 %v470
  %v493 = vpop.f32.mrf.mxu0
  %v494 = vadd.f32 0.0, %v493
  %v495 = vpop.f32.mrf.mxu0
  %496 = vdwg.mxu0
  %v497 = vadd.f32 %v446, %v494
  %499 = vrot.lane.b32.xlu0 %v481, 64
  %v500 = vpop.permute.xlu0 %499
  %v502 = vadd.f32 %v415, %v500
  %v503 = vmul.f32 %v453, %v85
  %v504 = vadd.f32 %v63, %v503
  %v505 = vmul.f32 %v464, %v74
  %v506 = vadd.f32 %v504, %v505
  %507 = vset.pattern.permute.xlu0 13
  %508 = vperm.xlu0 %507, %v33
  %v509 = vpop.permute.xlu0 %508
  %v511 = vmul.f32 %v509, %v81
  %v512 = vadd.f32 %v506, %v511
  %v513 = vmax.f32 %v512, 0.0
  %v514 = vmul.f32 %v464, %v85
  %v515 = vadd.f32 %v63, %v514
  %v516 = vmul.f32 %v509, %v74
  %v517 = vadd.f32 %v515, %v516
  %518 = vset.pattern.permute.xlu0 14
  %519 = vperm.xlu0 %518, %v33
  %v520 = vpop.permute.xlu0 %519
  %v522 = vmul.f32 %v520, %v81
  %v523 = vadd.f32 %v517, %v522
  %v524 = vmax.f32 %v523, 0.0
  %v525 = vmax.f32 %v513, %v524
  %v526 = vpack.c.bf16 %v525, %v525
  %527 = vmatpush.bf16.msra.mxu0 %v138
  %528 = vmatpush.bf16.msra.mxu0 %v137
  %529 = vmatpush.bf16.msra.mxu0 %v136
  %530 = vmatpush.bf16.msra.mxu0 %v135
  %531 = vmatpush.bf16.msra.mxu0 %v134
  %532 = vmatpush.bf16.msra.mxu0 %v133
  %533 = vmatpush.bf16.msra.mxu0 %v132
  %534 = vmatpush.bf16.msra.mxu0 %v131
  %535 = vmatmul.bf16.gmra.mxu0 %v526
  %v536 = vpop.f32.mrf.mxu0
  %v537 = vadd.f32 0.0, %v536
  %v538 = vpop.f32.mrf.mxu0
  %539 = vdwg.mxu0
  %540 = vmatpush.bf16.msra.mxu0 %v207
  %541 = vmatpush.bf16.msra.mxu0 %v206
  %542 = vmatpush.bf16.msra.mxu0 %v205
  %543 = vmatpush.bf16.msra.mxu0 %v204
  %544 = vmatpush.bf16.msra.mxu0 %v203
  %545 = vmatpush.bf16.msra.mxu0 %v202
  %546 = vmatpush.bf16.msra.mxu0 %v201
  %547 = vmatpush.bf16.msra.mxu0 %v200
  %548 = vmatmul.bf16.gmra.mxu0 %v526
  %v549 = vpop.f32.mrf.mxu0
  %v550 = vadd.f32 0.0, %v549
  %v551 = vpop.f32.mrf.mxu0
  %552 = vdwg.mxu0
  %v553 = vadd.f32 %v502, %v550
  %v554 = vmax.f32 %v497, %v553
  %v555 = vadd.f32 %v554, %v67
  %v556 = vmax.f32 %v555, 0.0
  %v557 = vpack.c.bf16 %v556, %v556
  %558 = vst.msk [vmem:[#allocation2 + $0x4] sm:$0xf] %vm318, %v557
  %560 = vrot.lane.b32.xlu0 %v537, 64
  %v561 = vpop.permute.xlu0 %560
  %v563 = vadd.f32 %v481, %v561
  %v564 = vmul.f32 %v509, %v85
  %v565 = vadd.f32 %v63, %v564
  %v566 = vmul.f32 %v520, %v74
  %v567 = vadd.f32 %v565, %v566
  %568 = vset.pattern.permute.xlu0 15
  %569 = vperm.xlu0 %568, %v33
  %v570 = vpop.permute.xlu0 %569
  %v572 = vmul.f32 %v570, %v81
  %v573 = vadd.f32 %v567, %v572
  %v574 = vmax.f32 %v573, 0.0
  %v575 = vmul.f32 %v520, %v85
  %v576 = vadd.f32 %v63, %v575
  %v577 = vmul.f32 %v570, %v74
  %v578 = vadd.f32 %v576, %v577
  %v579 = vmax.f32 %v578, 0.0
  %v580 = vmax.f32 %v574, %v579
  %v581 = vpack.c.bf16 %v580, %v580
  %582 = vmatpush.bf16.msra.mxu0 %v138
  %583 = vmatpush.bf16.msra.mxu0 %v137
  %584 = vmatpush.bf16.msra.mxu0 %v136
  %585 = vmatpush.bf16.msra.mxu0 %v135
  %586 = vmatpush.bf16.msra.mxu0 %v134
  %587 = vmatpush.bf16.msra.mxu0 %v133
  %588 = vmatpush.bf16.msra.mxu0 %v132
  %589 = vmatpush.bf16.msra.mxu0 %v131
  %590 = vmatmul.bf16.gmra.mxu0 %v581
  %v591 = vpop.f32.mrf.mxu0
  %v592 = vadd.f32 0.0, %v591
  %v593 = vpop.f32.mrf.mxu0
  %594 = vdwg.mxu0
  %595 = vmatpush.bf16.msra.mxu0 %v207
  %596 = vmatpush.bf16.msra.mxu0 %v206
  %597 = vmatpush.bf16.msra.mxu0 %v205
  %598 = vmatpush.bf16.msra.mxu0 %v204
  %599 = vmatpush.bf16.msra.mxu0 %v203
  %600 = vmatpush.bf16.msra.mxu0 %v202
  %601 = vmatpush.bf16.msra.mxu0 %v201
  %602 = vmatpush.bf16.msra.mxu0 %v200
  %603 = vmatmul.bf16.gmra.mxu0 %v581
  %v604 = vpop.f32.mrf.mxu0
  %v605 = vadd.f32 0.0, %v604
  %v606 = vpop.f32.mrf.mxu0
  %607 = vdwg.mxu0
  %v608 = vadd.f32 %v563, %v605
  %610 = vrot.lane.b32.xlu0 %v592, 64
  %v611 = vpop.permute.xlu0 %610
  %v613 = vadd.f32 %v537, %v611
  %v614 = vmax.f32 %v608, %v613
  %v615 = vadd.f32 %v614, %v67
  %v616 = vmax.f32 %v615, 0.0
  %v617 = vpack.c.bf16 %v616, %v616
  %619 = vrot.lane.b32.xlu0 %v617, 64
  %v620 = vpop.permute.xlu0 %619
  %622 = vst.msk [vmem:[#allocation2 + $0x4] sm:$0xf] %vm440, %v620
  %v623 = vld [vmem:[#allocation2] sm:$0xff]
  %v624 = vld [vmem:[%s5] sm:$0xf]
  %v625 = vld [vmem:[%s5 + $0x4] sm:$0xf]
  %v626 = vld [vmem:[%s5 + $0x8] sm:$0xf]
  %v627 = vld [vmem:[%s5 + $0xc] sm:$0xf]
  %v628 = vld [vmem:[%s5 + $0x10] sm:$0xf]
  %v629 = vld [vmem:[%s5 + $0x14] sm:$0xf]
  %v630 = vld [vmem:[%s5 + $0x18] sm:$0xf]
  %v631 = vld [vmem:[%s5 + $0x1c] sm:$0xf]
  %v632 = vld [vmem:[%s5 + $0x20] sm:$0xf]
  %v633 = vld [vmem:[%s5 + $0x24] sm:$0xf]
  %v634 = vld [vmem:[%s5 + $0x28] sm:$0xf]
  %v635 = vld [vmem:[%s5 + $0x2c] sm:$0xf]
  %v636 = vld [vmem:[%s5 + $0x30] sm:$0xf]
  %v637 = vld [vmem:[%s5 + $0x34] sm:$0xf]
  %v638 = vld [vmem:[%s5 + $0x38] sm:$0xf]
  %v639 = vld [vmem:[%s5 + $0x3c] sm:$0xf]
  %v640 = vld [vmem:[%s5 + $0x40] sm:$0xf]
  %v641 = vld [vmem:[%s5 + $0x44] sm:$0xf]
  %v642 = vld [vmem:[%s5 + $0x48] sm:$0xf]
  %v643 = vld [vmem:[%s5 + $0x4c] sm:$0xf]
  %v644 = vld [vmem:[%s5 + $0x50] sm:$0xf]
  %v645 = vld [vmem:[%s5 + $0x54] sm:$0xf]
  %v646 = vld [vmem:[%s5 + $0x58] sm:$0xf]
  %v647 = vld [vmem:[%s5 + $0x5c] sm:$0xf]
  %v648 = vld [vmem:[%s5 + $0x60] sm:$0xf]
  %v649 = vld [vmem:[%s5 + $0x64] sm:$0xf]
  %v650 = vld [vmem:[%s5 + $0x68] sm:$0xf]
  %v651 = vld [vmem:[%s5 + $0x6c] sm:$0xf]
  %v652 = vld [vmem:[%s5 + $0x70] sm:$0xf]
  %v653 = vld [vmem:[%s5 + $0x74] sm:$0xf]
  %v654 = vld [vmem:[%s5 + $0x78] sm:$0xf]
  %v655 = vld [vmem:[%s5 + $0x7c] sm:$0xf]
  %v657 = vperm.slane %v51, 0
  %v660 = vunpack.c.l.b16 %v623
  %v661 = vunpack.c.h.b16 %v623
  %v662 = vpack.c.b16 %v660, %v660
  %v663 = vpack.c.b16 %v661, %v661
  %v698 = vunpack.c.l.b16 %v624
  %v699 = vunpack.c.l.b16 %v625
  %v700 = vunpack.c.l.b16 %v626
  %v701 = vunpack.c.l.b16 %v627
  %v702 = vunpack.c.l.b16 %v628
  %v703 = vunpack.c.l.b16 %v629
  %v704 = vunpack.c.l.b16 %v630
  %v705 = vunpack.c.l.b16 %v631
  %v706 = vunpack.c.l.b16 %v632
  %v707 = vunpack.c.l.b16 %v633
  %v708 = vunpack.c.l.b16 %v634
  %v709 = vunpack.c.l.b16 %v635
  %v710 = vunpack.c.l.b16 %v636
  %v711 = vunpack.c.l.b16 %v637
  %v712 = vunpack.c.l.b16 %v638
  %v713 = vunpack.c.l.b16 %v639
  %v714 = vunpack.c.l.b16 %v640
  %v715 = vunpack.c.l.b16 %v641
  %v716 = vunpack.c.l.b16 %v642
  %v717 = vunpack.c.l.b16 %v643
  %v718 = vunpack.c.l.b16 %v644
  %v719 = vunpack.c.l.b16 %v645
  %v720 = vunpack.c.l.b16 %v646
  %v721 = vunpack.c.l.b16 %v647
  %v722 = vunpack.c.l.b16 %v648
  %v723 = vunpack.c.l.b16 %v649
  %v724 = vunpack.c.l.b16 %v650
  %v725 = vunpack.c.l.b16 %v651
  %v726 = vunpack.c.l.b16 %v652
  %v727 = vunpack.c.l.b16 %v653
  %v728 = vunpack.c.l.b16 %v654
  %v729 = vunpack.c.l.b16 %v655
  %v730 = vpack.c.b16 %v699, %v698
  %v731 = vpack.c.b16 %v701, %v700
  %v732 = vpack.c.b16 %v703, %v702
  %v733 = vpack.c.b16 %v705, %v704
  %v734 = vpack.c.b16 %v707, %v706
  %v735 = vpack.c.b16 %v709, %v708
  %v736 = vpack.c.b16 %v711, %v710
  %v737 = vpack.c.b16 %v713, %v712
  %v738 = vpack.c.b16 %v715, %v714
  %v739 = vpack.c.b16 %v717, %v716
  %v740 = vpack.c.b16 %v719, %v718
  %v741 = vpack.c.b16 %v721, %v720
  %v742 = vpack.c.b16 %v723, %v722
  %v743 = vpack.c.b16 %v725, %v724
  %v744 = vpack.c.b16 %v727, %v726
  %v745 = vpack.c.b16 %v729, %v728
  %762 = vmatpush.bf16.msra.mxu0 %v737
  %763 = vmatpush.bf16.msra.mxu0 %v736
  %764 = vmatpush.bf16.msra.mxu0 %v735
  %765 = vmatpush.bf16.msra.mxu0 %v734
  %766 = vmatpush.bf16.msra.mxu0 %v733
  %767 = vmatpush.bf16.msra.mxu0 %v732
  %768 = vmatpush.bf16.msra.mxu0 %v731
  %769 = vmatpush.bf16.msra.mxu0 %v730
  %770 = vmatmul.bf16.gmra.mxu0 %v662
  %v771 = vpop.f32.mrf.mxu0
  %v772 = vadd.f32 %v657, %v771
  %v773 = vpop.f32.mrf.mxu0
  %774 = vdwg.mxu0
  %775 = vmatpush.bf16.msra.mxu0 %v745
  %776 = vmatpush.bf16.msra.mxu0 %v744
  %777 = vmatpush.bf16.msra.mxu0 %v743
  %778 = vmatpush.bf16.msra.mxu0 %v742
  %779 = vmatpush.bf16.msra.mxu0 %v741
  %780 = vmatpush.bf16.msra.mxu0 %v740
  %781 = vmatpush.bf16.msra.mxu0 %v739
  %782 = vmatpush.bf16.msra.mxu0 %v738
  %783 = vmatmul.bf16.gmra.mxu0 %v663
  %v784 = vpop.f32.mrf.mxu0
  %v785 = vadd.f32 %v772, %v784
  %v786 = vpop.f32.mrf.mxu0
  %787 = vdwg.mxu0
  %v788 = vmax.f32 %v785, 0.0
  %v789 = vpack.c.bf16 %v788, %v788
  %v791 = vperm.slane %v60, 0
  %v801 = vunpack.c.l.b16 %v52
  %v802 = vunpack.c.l.b16 %v53
  %v803 = vunpack.c.l.b16 %v54
  %v804 = vunpack.c.l.b16 %v55
  %v805 = vunpack.c.l.b16 %v56
  %v806 = vunpack.c.l.b16 %v57
  %v807 = vunpack.c.l.b16 %v58
  %v808 = vunpack.c.l.b16 %v59
  %v809 = vpack.c.b16 %v802, %v801
  %v810 = vpack.c.b16 %v804, %v803
  %v811 = vpack.c.b16 %v806, %v805
  %v812 = vpack.c.b16 %v808, %v807
  %vm817 = vcmask 523264
  %v819 = vsel %vm817, %v789, 0
  %821 = vmatpush.bf16.msra.mxu0 0
  %822 = vmatpush.bf16.msra.mxu0 0
  %823 = vmatpush.bf16.msra.mxu0 0
  %824 = vmatpush.bf16.msra.mxu0 0
  %825 = vmatpush.bf16.msra.mxu0 %v812
  %826 = vmatpush.bf16.msra.mxu0 %v811
  %827 = vmatpush.bf16.msra.mxu0 %v810
  %828 = vmatpush.bf16.msra.mxu0 %v809
  %829 = vmatmul.bf16.gmra.mxu0 %v819
  %v830 = vpop.f32.mrf.mxu0
  %v831 = vadd.f32 %v791, %v830
  %v832 = vpop.f32.mrf.mxu0
  %833 = vdwg.mxu0
  %834 = vst [vmem:[%s9] sm:$0xff] %v831
  // Predicated region
  $region38: #{cnn1d_forward.1} parent=0 // pred_check
    _
  $region39: #{cnn1d_forward.1} parent=0 // pred_check_branch
    %836 = sbr.rel (0) target = $region41
  $region40: #{cnn1d_forward.1} parent=0 // pred_region
    _
  $region41: #{cnn1d_forward.1} parent=0 // pred_fallthru
    _
  // Predicated region
  $region42: #{cnn1d_forward.1} parent=0 // pred_check
    _
  $region43: #{cnn1d_forward.1} parent=0 // pred_check_branch
    %838 = sbr.rel (0) target = $region45
  $region44: #{cnn1d_forward.1} parent=0 // pred_region
    _
  $region45: #{cnn1d_forward.1} parent=0 // pred_fallthru
    _

</llo_original>
